<compile_context>
chip_gen: v5e
topology: v5e:2x2
jax: 0.10.0
libtpu: 0.0.40
codegen_flags: <defaults>
</compile_context>

<pallas_src>
import jax
import jax.numpy as jnp
from jax import lax
from jax.experimental import pallas as pl
from jax.experimental.pallas import tpu as pltpu


def make_vehicle_lstm_kernel(num_layers, hidden_size, seq_len, batch_tile):
    H, T, Bt = hidden_size, seq_len, batch_tile

    def kernel(*refs):
        x_ref = refs[0]                                   # (T*Bt, I)
        layer_refs = refs[1:1 + 3 * num_layers]
        wfc_ref, bfc_ref, out_ref, seq_ref, pg_ref = refs[1 + 3 * num_layers:]

        # Loop-invariant lane mask picking the tanh gate (g) among the 4H gate
        # columns (PyTorch gate order i, f, g, o). Hoisted once — JAX does not
        # CSE broadcasts inside the time loop.
        lane_ids = lax.broadcasted_iota(jnp.int32, (Bt, 4 * H), 1)
        tanh_mask = (lane_ids >= 2 * H) & (lane_ids < 3 * H)

        for l in range(num_layers):
            # NOTE: weights are hoisted into values here; at H<=128 this is a
            # handful of vregs. For much larger H keep them VMEM-resident /
            # tile the 4H columns instead (regalloc pressure).
            wih_t = layer_refs[3 * l + 0][...]            # (in, 4H)
            whh_t = layer_refs[3 * l + 1][...]            # (H, 4H)
            b = layer_refs[3 * l + 2][...]                # (1, 4H)

            # Input-to-gates for the WHOLE sequence as one MXU matmul, bias
            # folded in. For l>0 this reads the full previous-layer sequence
            # before the time loop below starts overwriting seq_ref (safe:
            # per-ref program order is preserved).
            inp2d = x_ref[...] if l == 0 else seq_ref[...]
            pg_ref[...] = (jnp.dot(inp2d, wih_t,
                                   preferred_element_type=jnp.float32) + b)

            def body(t, carry, whh_t=whh_t):
                h, c = carry
                row = pl.multiple_of(t * Bt, Bt)
                gates = (jnp.dot(h, whh_t, preferred_element_type=jnp.float32)
                         + pg_ref[pl.ds(row, Bt), :])     # (Bt, 4H)
                # Full-vreg EUP pushes + lane-mask select, then slice.
                act = jnp.where(tanh_mask, jnp.tanh(gates),
                                jax.nn.sigmoid(gates))
                i_g = act[:, 0 * H:1 * H]
                f_g = act[:, 1 * H:2 * H]
                g_g = act[:, 2 * H:3 * H]
                o_g = act[:, 3 * H:4 * H]
                c_new = f_g * c + i_g * g_g
                h_new = o_g * jnp.tanh(c_new)
                seq_ref[pl.ds(row, Bt), :] = h_new        # store h_t
                return (h_new, c_new)

            init = (jnp.zeros((Bt, H), jnp.float32),      # h0 = 0
                    jnp.zeros((Bt, H), jnp.float32))      # c0 = 0
            lax.fori_loop(0, T, body, init, unroll=True)

        # FC head over the whole sequence: one (T*Bt, H) @ (H, O_pad) matmul,
        # single lane-dense store.
        out_ref[...] = (jnp.dot(seq_ref[...], wfc_ref[...],
                                preferred_element_type=jnp.float32)
                        + bfc_ref[...])

    return kernel


def init_params(key, input_size, hidden_size, num_layers, output_size):
    """Deterministic init mirroring nn.LSTM / nn.Linear param shapes."""
    k = 1.0 / float(hidden_size) ** 0.5
    layer_params = []
    for l in range(num_layers):
        in_sz = input_size if l == 0 else hidden_size
        key, k1, k2, k3, k4 = jax.random.split(key, 5)
        w_ih = jax.random.uniform(k1, (4 * hidden_size, in_sz), jnp.float32, -k, k)
        w_hh = jax.random.uniform(k2, (4 * hidden_size, hidden_size), jnp.float32, -k, k)
        b_ih = jax.random.uniform(k3, (4 * hidden_size,), jnp.float32, -k, k)
        b_hh = jax.random.uniform(k4, (4 * hidden_size,), jnp.float32, -k, k)
        layer_params.append((w_ih, w_hh, b_ih, b_hh))
    key, k5, k6 = jax.random.split(key, 3)
    w_fc = jax.random.uniform(k5, (output_size, hidden_size), jnp.float32, -k, k)
    b_fc = jax.random.uniform(k6, (output_size,), jnp.float32, -k, k)
    return layer_params, (w_fc, b_fc)


def vehicle_lstm_forward(x, layer_params, fc_params, hidden_size):
    """x: (B, T, input_size) batch-first, like the PyTorch module."""
    B, T, I = x.shape
    num_layers = len(layer_params)
    w_fc, b_fc = fc_params
    O = w_fc.shape[0]

    B_TILE = 8                                            # f32 sublane multiple
    Bp = ((B + B_TILE - 1) // B_TILE) * B_TILE            # padded batch
    n_btiles = Bp // B_TILE
    Op = ((O + 127) // 128) * 128                         # lane-dense output
    TB = T * B_TILE

    # Time-major, batch padded, then pre-tiled to (n_btiles, T*B_TILE, I) so
    # each grid step sees a flat, sublane-aligned 2D slab (no in-kernel
    # reshapes needed). Pure layout plumbing in the wrapper.
    x_tm = jnp.transpose(x, (1, 0, 2)).astype(jnp.float32)          # (T, B, I)
    x_tm = jnp.pad(x_tm, ((0, 0), (0, Bp - B), (0, 0)))             # (T, Bp, I)
    x_tiles = (x_tm.reshape(T, n_btiles, B_TILE, I)
               .transpose(1, 0, 2, 3)
               .reshape(n_btiles, TB, I))

    kernel_inputs = [x_tiles]
    for (w_ih, w_hh, b_ih, b_hh) in layer_params:
        kernel_inputs.append(jnp.transpose(w_ih).astype(jnp.float32))        # (in, 4H)
        kernel_inputs.append(jnp.transpose(w_hh).astype(jnp.float32))        # (H, 4H)
        kernel_inputs.append(
            (b_ih + b_hh).reshape(1, -1).astype(jnp.float32))                # (1, 4H)
    wfc_t = jnp.pad(jnp.transpose(w_fc).astype(jnp.float32),
                    ((0, 0), (0, Op - O)))                                   # (H, Op)
    bfc = jnp.pad(b_fc.astype(jnp.float32), (0, Op - O)).reshape(1, -1)      # (1, Op)
    kernel_inputs.append(wfc_t)
    kernel_inputs.append(bfc)

    def full_spec(a):
        return pl.BlockSpec(a.shape, lambda j, n=a.ndim: (0,) * n)

    in_specs = [pl.BlockSpec((None, TB, I), lambda j: (j, 0, 0))]
    in_specs += [full_spec(a) for a in kernel_inputs[1:]]

    out_tiles = pl.pallas_call(
        make_vehicle_lstm_kernel(num_layers, hidden_size, T, B_TILE),
        out_shape=jax.ShapeDtypeStruct((n_btiles, TB, Op), jnp.float32),
        grid=(n_btiles,),
        in_specs=in_specs,
        out_specs=pl.BlockSpec((None, TB, Op), lambda j: (j, 0, 0)),
        scratch_shapes=[
            pltpu.VMEM((TB, hidden_size), jnp.float32),       # h-sequence
            pltpu.VMEM((TB, 4 * hidden_size), jnp.float32),   # pre-gates
        ],
        compiler_params=pltpu.CompilerParams(
            dimension_semantics=("parallel",)),               # batch tiles
    )(*kernel_inputs)

    # Undo tiling / padding: (n_btiles, T*Bt, Op) -> (B, T, O)
    out = (out_tiles.reshape(n_btiles, T, B_TILE, Op)
           .transpose(1, 0, 2, 3)
           .reshape(T, Bp, Op))[:, :B, :O]
    return jnp.transpose(out, (1, 0, 2))


def reference_forward(x, layer_params, fc_params, hidden_size):
    """Pure-JAX reference matching nn.LSTM(batch_first=True) + nn.Linear."""
    B, T, _ = x.shape
    inp = x.astype(jnp.float32)
    for (w_ih, w_hh, b_ih, b_hh) in layer_params:
        def cell(carry, xt, w_ih=w_ih, w_hh=w_hh, b_ih=b_ih, b_hh=b_hh):
            h, c = carry
            gates = xt @ w_ih.T + h @ w_hh.T + b_ih + b_hh
            i, f, g, o = jnp.split(gates, 4, axis=-1)
            i = jax.nn.sigmoid(i)
            f = jax.nn.sigmoid(f)
            g = jnp.tanh(g)
            o = jax.nn.sigmoid(o)
            c = f * c + i * g
            h = o * jnp.tanh(c)
            return (h, c), h
        h0 = jnp.zeros((B, hidden_size), jnp.float32)
        c0 = jnp.zeros((B, hidden_size), jnp.float32)
        _, hs = lax.scan(cell, (h0, c0), jnp.transpose(inp, (1, 0, 2)))
        inp = jnp.transpose(hs, (1, 0, 2))
    w_fc, b_fc = fc_params
    return inp @ w_fc.T + b_fc


if __name__ == "__main__":
    # Small shapes consistent with the module's forward:
    # x: (batch, seq, input_size); output: (batch, seq, output_size)
    batch, seq, input_size = 2, 8, 4
    hidden_size, num_layers, output_size = 32, 2, 4

    key = jax.random.PRNGKey(0)
    key, xk = jax.random.split(key)
    x = jax.random.normal(xk, (batch, seq, input_size), dtype=jnp.float32)

    layer_params, fc_params = init_params(
        key, input_size, hidden_size, num_layers, output_size)

    out = vehicle_lstm_forward(x, layer_params, fc_params, hidden_size)
    out = jax.block_until_ready(out)

    ref = reference_forward(x, layer_params, fc_params, hidden_size)
    assert out.shape == (batch, seq, output_size), out.shape
    assert jnp.allclose(out, ref, atol=2e-3, rtol=2e-3), (
        float(jnp.max(jnp.abs(out - ref))))

    print("KERNEL_OK")
</pallas_src>

<mosaic_0001>
module attributes {stable_mosaic.version = 11 : i64} {
  func.func @kernel(%arg0: i32, %arg1: memref<1x64x4xf32, #tpu.memory_space<vmem>>, %arg2: memref<4x128xf32, #tpu.memory_space<vmem>>, %arg3: memref<32x128xf32, #tpu.memory_space<vmem>>, %arg4: memref<1x128xf32, #tpu.memory_space<vmem>>, %arg5: memref<32x128xf32, #tpu.memory_space<vmem>>, %arg6: memref<32x128xf32, #tpu.memory_space<vmem>>, %arg7: memref<1x128xf32, #tpu.memory_space<vmem>>, %arg8: memref<32x128xf32, #tpu.memory_space<vmem>>, %arg9: memref<1x128xf32, #tpu.memory_space<vmem>>, %arg10: memref<1x64x128xf32, #tpu.memory_space<vmem>>, %arg11: memref<64x32xf32, #tpu.memory_space<vmem>>, %arg12: memref<64x128xf32, #tpu.memory_space<vmem>>) attributes {dimension_semantics = [#tpu.dimension_semantics<parallel>], iteration_bounds = array<i64: 1>, scalar_prefetch = 0 : i64, scratch_operands = 2 : i64, tpu.core_type = #tpu.core_type<tc>, window_params = [{transform_indices = @transform_0, window_bounds = array<i64: 1, 64, 4>}, {pipeline_mode = #tpu.pipeline_mode<synchronous>, transform_indices = @transform_1, window_bounds = array<i64: 4, 128>}, {pipeline_mode = #tpu.pipeline_mode<synchronous>, transform_indices = @transform_2, window_bounds = array<i64: 32, 128>}, {pipeline_mode = #tpu.pipeline_mode<synchronous>, transform_indices = @transform_3, window_bounds = array<i64: 1, 128>}, {pipeline_mode = #tpu.pipeline_mode<synchronous>, transform_indices = @transform_4, window_bounds = array<i64: 32, 128>}, {pipeline_mode = #tpu.pipeline_mode<synchronous>, transform_indices = @transform_5, window_bounds = array<i64: 32, 128>}, {pipeline_mode = #tpu.pipeline_mode<synchronous>, transform_indices = @transform_6, window_bounds = array<i64: 1, 128>}, {pipeline_mode = #tpu.pipeline_mode<synchronous>, transform_indices = @transform_7, window_bounds = array<i64: 32, 128>}, {pipeline_mode = #tpu.pipeline_mode<synchronous>, transform_indices = @transform_8, window_bounds = array<i64: 1, 128>}, {transform_indices = @transform_9, window_bounds = array<i64: 1, 64, 128>}]} {
    %0 = tpu.iota {dimensions = array<i32: 1>} : vector<8x128xi32>
    %c64_i32 = arith.constant 64 : i32
    %1 = vector.broadcast %c64_i32 : i32 to vector<8x128xi32>
    %2 = arith.cmpi sge, %0, %1 : vector<8x128xi32>
    %c96_i32 = arith.constant 96 : i32
    %3 = vector.broadcast %c96_i32 : i32 to vector<8x128xi32>
    %4 = arith.cmpi slt, %0, %3 : vector<8x128xi32>
    %5 = arith.andi %2, %4 : vector<8x128xi1>
    %c0 = arith.constant 0 : index
    %c0_0 = arith.constant 0 : index
    %6 = vector.load %arg2[%c0, %c0_0] : memref<4x128xf32, #tpu.memory_space<vmem>>, vector<4x128xf32>
    %c0_1 = arith.constant 0 : index
    %c0_2 = arith.constant 0 : index
    %7 = vector.load %arg3[%c0_1, %c0_2] : memref<32x128xf32, #tpu.memory_space<vmem>>, vector<32x128xf32>
    %c0_3 = arith.constant 0 : index
    %c0_4 = arith.constant 0 : index
    %8 = vector.load %arg4[%c0_3, %c0_4] : memref<1x128xf32, #tpu.memory_space<vmem>>, vector<1x128xf32>
    %c0_5 = arith.constant 0 : index
    %c0_6 = arith.constant 0 : index
    %c0_7 = arith.constant 0 : index
    %9 = vector.load %arg1[%c0_5, %c0_6, %c0_7] : memref<1x64x4xf32, #tpu.memory_space<vmem>>, vector<1x64x4xf32>
    %10 = vector.shape_cast %9 : vector<1x64x4xf32> to vector<64x4xf32>
    %cst = arith.constant dense<0.000000e+00> : vector<64x128xf32>
    %11 = tpu.matmul %10, %6, %cst {dimension_numbers = #tpu.dot_dimension_numbers<[1], [0], [0], [1], [0, 0, 1, 1], [], []>} : vector<64x4xf32>, vector<4x128xf32>, vector<64x128xf32> -> vector<64x128xf32>
    %12 = vector.broadcast %8 : vector<1x128xf32> to vector<64x128xf32>
    %13 = arith.addf %11, %12 : vector<64x128xf32>
    %c0_8 = arith.constant 0 : index
    %c0_9 = arith.constant 0 : index
    %14 = vector.load %arg12[%c0_8, %c0_9] : memref<64x128xf32, #tpu.memory_space<vmem>>, vector<64x128xf32>
    tpu.vector_store %arg12[%c0_8, %c0_9], %13 {strides = array<i32>} : memref<64x128xf32, #tpu.memory_space<vmem>>, vector<64x128xf32>,
    %cst_10 = arith.constant 0.000000e+00 : f32
    %15 = vector.broadcast %cst_10 : f32 to vector<8x32xf32>
    %cst_11 = arith.constant 0.000000e+00 : f32
    %16 = vector.broadcast %cst_11 : f32 to vector<8x32xf32>
    %c0_i32 = arith.constant 0 : i32
    %c8_i32 = arith.constant 8 : i32
    %17 = arith.muli %c0_i32, %c8_i32 : i32
    %18 = tpu.assume_multiple %17, 8 : i32
    %cst_12 = arith.constant dense<0.000000e+00> : vector<8x128xf32>
    %19 = tpu.matmul %15, %7, %cst_12 {dimension_numbers = #tpu.dot_dimension_numbers<[1], [0], [0], [1], [0, 0, 1, 1], [], []>} : vector<8x32xf32>, vector<32x128xf32>, vector<8x128xf32> -> vector<8x128xf32>
    %20 = arith.index_cast %18 : i32 to index
    %c0_13 = arith.constant 0 : index
    %21 = vector.load %arg12[%20, %c0_13] : memref<64x128xf32, #tpu.memory_space<vmem>>, vector<8x128xf32>
    %22 = arith.addf %19, %21 : vector<8x128xf32>
    %23 = math.tanh %22 : vector<8x128xf32>
    %24 = arith.negf %22 : vector<8x128xf32>
    %25 = math.exp %24 : vector<8x128xf32>
    %cst_14 = arith.constant 1.000000e+00 : f32
    %26 = vector.broadcast %cst_14 : f32 to vector<8x128xf32>
    %27 = arith.addf %26, %25 : vector<8x128xf32>
    %28 = arith.divf %26, %27 : vector<8x128xf32>
    %29 = arith.select %5, %23, %28 : vector<8x128xi1>, vector<8x128xf32>
    %30 = vector.extract_strided_slice %29 {offsets = [0, 0], sizes = [8, 32], strides = [1, 1]} : vector<8x128xf32> to vector<8x32xf32>
    %31 = vector.extract_strided_slice %29 {offsets = [0, 32], sizes = [8, 32], strides = [1, 1]} : vector<8x128xf32> to vector<8x32xf32>
    %32 = vector.extract_strided_slice %29 {offsets = [0, 64], sizes = [8, 32], strides = [1, 1]} : vector<8x128xf32> to vector<8x32xf32>
    %33 = vector.extract_strided_slice %29 {offsets = [0, 96], sizes = [8, 32], strides = [1, 1]} : vector<8x128xf32> to vector<8x32xf32>
    %34 = arith.mulf %31, %16 : vector<8x32xf32>
    %35 = arith.mulf %30, %32 : vector<8x32xf32>
    %36 = arith.addf %34, %35 : vector<8x32xf32>
    %37 = math.tanh %36 : vector<8x32xf32>
    %38 = arith.mulf %33, %37 : vector<8x32xf32>
    %39 = arith.index_cast %18 : i32 to index
    %c0_15 = arith.constant 0 : index
    %40 = vector.load %arg11[%39, %c0_15] : memref<64x32xf32, #tpu.memory_space<vmem>>, vector<8x32xf32>
    tpu.vector_store %arg11[%39, %c0_15], %38 {strides = array<i32>} : memref<64x32xf32, #tpu.memory_space<vmem>>, vector<8x32xf32>,
    %c1_i32 = arith.constant 1 : i32
    %c8_i32_16 = arith.constant 8 : i32
    %41 = arith.muli %c1_i32, %c8_i32_16 : i32
    %42 = tpu.assume_multiple %41, 8 : i32
    %cst_17 = arith.constant dense<0.000000e+00> : vector<8x128xf32>
    %43 = tpu.matmul %38, %7, %cst_17 {dimension_numbers = #tpu.dot_dimension_numbers<[1], [0], [0], [1], [0, 0, 1, 1], [], []>} : vector<8x32xf32>, vector<32x128xf32>, vector<8x128xf32> -> vector<8x128xf32>
    %44 = arith.index_cast %42 : i32 to index
    %c0_18 = arith.constant 0 : index
    %45 = vector.load %arg12[%44, %c0_18] : memref<64x128xf32, #tpu.memory_space<vmem>>, vector<8x128xf32>
    %46 = arith.addf %43, %45 : vector<8x128xf32>
    %47 = math.tanh %46 : vector<8x128xf32>
    %48 = arith.negf %46 : vector<8x128xf32>
    %49 = math.exp %48 : vector<8x128xf32>
    %cst_19 = arith.constant 1.000000e+00 : f32
    %50 = vector.broadcast %cst_19 : f32 to vector<8x128xf32>
    %51 = arith.addf %50, %49 : vector<8x128xf32>
    %52 = arith.divf %50, %51 : vector<8x128xf32>
    %53 = arith.select %5, %47, %52 : vector<8x128xi1>, vector<8x128xf32>
    %54 = vector.extract_strided_slice %53 {offsets = [0, 0], sizes = [8, 32], strides = [1, 1]} : vector<8x128xf32> to vector<8x32xf32>
    %55 = vector.extract_strided_slice %53 {offsets = [0, 32], sizes = [8, 32], strides = [1, 1]} : vector<8x128xf32> to vector<8x32xf32>
    %56 = vector.extract_strided_slice %53 {offsets = [0, 64], sizes = [8, 32], strides = [1, 1]} : vector<8x128xf32> to vector<8x32xf32>
    %57 = vector.extract_strided_slice %53 {offsets = [0, 96], sizes = [8, 32], strides = [1, 1]} : vector<8x128xf32> to vector<8x32xf32>
    %58 = arith.mulf %55, %36 : vector<8x32xf32>
    %59 = arith.mulf %54, %56 : vector<8x32xf32>
    %60 = arith.addf %58, %59 : vector<8x32xf32>
    %61 = math.tanh %60 : vector<8x32xf32>
    %62 = arith.mulf %57, %61 : vector<8x32xf32>
    %63 = arith.index_cast %42 : i32 to index
    %c0_20 = arith.constant 0 : index
    %64 = vector.load %arg11[%63, %c0_20] : memref<64x32xf32, #tpu.memory_space<vmem>>, vector<8x32xf32>
    tpu.vector_store %arg11[%63, %c0_20], %62 {strides = array<i32>} : memref<64x32xf32, #tpu.memory_space<vmem>>, vector<8x32xf32>,
    %c2_i32 = arith.constant 2 : i32
    %c8_i32_21 = arith.constant 8 : i32
    %65 = arith.muli %c2_i32, %c8_i32_21 : i32
    %66 = tpu.assume_multiple %65, 8 : i32
    %cst_22 = arith.constant dense<0.000000e+00> : vector<8x128xf32>
    %67 = tpu.matmul %62, %7, %cst_22 {dimension_numbers = #tpu.dot_dimension_numbers<[1], [0], [0], [1], [0, 0, 1, 1], [], []>} : vector<8x32xf32>, vector<32x128xf32>, vector<8x128xf32> -> vector<8x128xf32>
    %68 = arith.index_cast %66 : i32 to index
    %c0_23 = arith.constant 0 : index
    %69 = vector.load %arg12[%68, %c0_23] : memref<64x128xf32, #tpu.memory_space<vmem>>, vector<8x128xf32>
    %70 = arith.addf %67, %69 : vector<8x128xf32>
    %71 = math.tanh %70 : vector<8x128xf32>
    %72 = arith.negf %70 : vector<8x128xf32>
    %73 = math.exp %72 : vector<8x128xf32>
    %cst_24 = arith.constant 1.000000e+00 : f32
    %74 = vector.broadcast %cst_24 : f32 to vector<8x128xf32>
    %75 = arith.addf %74, %73 : vector<8x128xf32>
    %76 = arith.divf %74, %75 : vector<8x128xf32>
    %77 = arith.select %5, %71, %76 : vector<8x128xi1>, vector<8x128xf32>
    %78 = vector.extract_strided_slice %77 {offsets = [0, 0], sizes = [8, 32], strides = [1, 1]} : vector<8x128xf32> to vector<8x32xf32>
    %79 = vector.extract_strided_slice %77 {offsets = [0, 32], sizes = [8, 32], strides = [1, 1]} : vector<8x128xf32> to vector<8x32xf32>
    %80 = vector.extract_strided_slice %77 {offsets = [0, 64], sizes = [8, 32], strides = [1, 1]} : vector<8x128xf32> to vector<8x32xf32>
    %81 = vector.extract_strided_slice %77 {offsets = [0, 96], sizes = [8, 32], strides = [1, 1]} : vector<8x128xf32> to vector<8x32xf32>
    %82 = arith.mulf %79, %60 : vector<8x32xf32>
    %83 = arith.mulf %78, %80 : vector<8x32xf32>
    %84 = arith.addf %82, %83 : vector<8x32xf32>
    %85 = math.tanh %84 : vector<8x32xf32>
    %86 = arith.mulf %81, %85 : vector<8x32xf32>
    %87 = arith.index_cast %66 : i32 to index
    %c0_25 = arith.constant 0 : index
    %88 = vector.load %arg11[%87, %c0_25] : memref<64x32xf32, #tpu.memory_space<vmem>>, vector<8x32xf32>
    tpu.vector_store %arg11[%87, %c0_25], %86 {strides = array<i32>} : memref<64x32xf32, #tpu.memory_space<vmem>>, vector<8x32xf32>,
    %c3_i32 = arith.constant 3 : i32
    %c8_i32_26 = arith.constant 8 : i32
    %89 = arith.muli %c3_i32, %c8_i32_26 : i32
    %90 = tpu.assume_multiple %89, 8 : i32
    %cst_27 = arith.constant dense<0.000000e+00> : vector<8x128xf32>
    %91 = tpu.matmul %86, %7, %cst_27 {dimension_numbers = #tpu.dot_dimension_numbers<[1], [0], [0], [1], [0, 0, 1, 1], [], []>} : vector<8x32xf32>, vector<32x128xf32>, vector<8x128xf32> -> vector<8x128xf32>
    %92 = arith.index_cast %90 : i32 to index
    %c0_28 = arith.constant 0 : index
    %93 = vector.load %arg12[%92, %c0_28] : memref<64x128xf32, #tpu.memory_space<vmem>>, vector<8x128xf32>
    %94 = arith.addf %91, %93 : vector<8x128xf32>
    %95 = math.tanh %94 : vector<8x128xf32>
    %96 = arith.negf %94 : vector<8x128xf32>
    %97 = math.exp %96 : vector<8x128xf32>
    %cst_29 = arith.constant 1.000000e+00 : f32
    %98 = vector.broadcast %cst_29 : f32 to vector<8x128xf32>
    %99 = arith.addf %98, %97 : vector<8x128xf32>
    %100 = arith.divf %98, %99 : vector<8x128xf32>
    %101 = arith.select %5, %95, %100 : vector<8x128xi1>, vector<8x128xf32>
    %102 = vector.extract_strided_slice %101 {offsets = [0, 0], sizes = [8, 32], strides = [1, 1]} : vector<8x128xf32> to vector<8x32xf32>
    %103 = vector.extract_strided_slice %101 {offsets = [0, 32], sizes = [8, 32], strides = [1, 1]} : vector<8x128xf32> to vector<8x32xf32>
    %104 = vector.extract_strided_slice %101 {offsets = [0, 64], sizes = [8, 32], strides = [1, 1]} : vector<8x128xf32> to vector<8x32xf32>
    %105 = vector.extract_strided_slice %101 {offsets = [0, 96], sizes = [8, 32], strides = [1, 1]} : vector<8x128xf32> to vector<8x32xf32>
    %106 = arith.mulf %103, %84 : vector<8x32xf32>
    %107 = arith.mulf %102, %104 : vector<8x32xf32>
    %108 = arith.addf %106, %107 : vector<8x32xf32>
    %109 = math.tanh %108 : vector<8x32xf32>
    %110 = arith.mulf %105, %109 : vector<8x32xf32>
    %111 = arith.index_cast %90 : i32 to index
    %c0_30 = arith.constant 0 : index
    %112 = vector.load %arg11[%111, %c0_30] : memref<64x32xf32, #tpu.memory_space<vmem>>, vector<8x32xf32>
    tpu.vector_store %arg11[%111, %c0_30], %110 {strides = array<i32>} : memref<64x32xf32, #tpu.memory_space<vmem>>, vector<8x32xf32>,
    %c4_i32 = arith.constant 4 : i32
    %c8_i32_31 = arith.constant 8 : i32
    %113 = arith.muli %c4_i32, %c8_i32_31 : i32
    %114 = tpu.assume_multiple %113, 8 : i32
    %cst_32 = arith.constant dense<0.000000e+00> : vector<8x128xf32>
    %115 = tpu.matmul %110, %7, %cst_32 {dimension_numbers = #tpu.dot_dimension_numbers<[1], [0], [0], [1], [0, 0, 1, 1], [], []>} : vector<8x32xf32>, vector<32x128xf32>, vector<8x128xf32> -> vector<8x128xf32>
    %116 = arith.index_cast %114 : i32 to index
    %c0_33 = arith.constant 0 : index
    %117 = vector.load %arg12[%116, %c0_33] : memref<64x128xf32, #tpu.memory_space<vmem>>, vector<8x128xf32>
    %118 = arith.addf %115, %117 : vector<8x128xf32>
    %119 = math.tanh %118 : vector<8x128xf32>
    %120 = arith.negf %118 : vector<8x128xf32>
    %121 = math.exp %120 : vector<8x128xf32>
    %cst_34 = arith.constant 1.000000e+00 : f32
    %122 = vector.broadcast %cst_34 : f32 to vector<8x128xf32>
    %123 = arith.addf %122, %121 : vector<8x128xf32>
    %124 = arith.divf %122, %123 : vector<8x128xf32>
    %125 = arith.select %5, %119, %124 : vector<8x128xi1>, vector<8x128xf32>
    %126 = vector.extract_strided_slice %125 {offsets = [0, 0], sizes = [8, 32], strides = [1, 1]} : vector<8x128xf32> to vector<8x32xf32>
    %127 = vector.extract_strided_slice %125 {offsets = [0, 32], sizes = [8, 32], strides = [1, 1]} : vector<8x128xf32> to vector<8x32xf32>
    %128 = vector.extract_strided_slice %125 {offsets = [0, 64], sizes = [8, 32], strides = [1, 1]} : vector<8x128xf32> to vector<8x32xf32>
    %129 = vector.extract_strided_slice %125 {offsets = [0, 96], sizes = [8, 32], strides = [1, 1]} : vector<8x128xf32> to vector<8x32xf32>
    %130 = arith.mulf %127, %108 : vector<8x32xf32>
    %131 = arith.mulf %126, %128 : vector<8x32xf32>
    %132 = arith.addf %130, %131 : vector<8x32xf32>
    %133 = math.tanh %132 : vector<8x32xf32>
    %134 = arith.mulf %129, %133 : vector<8x32xf32>
    %135 = arith.index_cast %114 : i32 to index
    %c0_35 = arith.constant 0 : index
    %136 = vector.load %arg11[%135, %c0_35] : memref<64x32xf32, #tpu.memory_space<vmem>>, vector<8x32xf32>
    tpu.vector_store %arg11[%135, %c0_35], %134 {strides = array<i32>} : memref<64x32xf32, #tpu.memory_space<vmem>>, vector<8x32xf32>,
    %c5_i32 = arith.constant 5 : i32
    %c8_i32_36 = arith.constant 8 : i32
    %137 = arith.muli %c5_i32, %c8_i32_36 : i32
    %138 = tpu.assume_multiple %137, 8 : i32
    %cst_37 = arith.constant dense<0.000000e+00> : vector<8x128xf32>
    %139 = tpu.matmul %134, %7, %cst_37 {dimension_numbers = #tpu.dot_dimension_numbers<[1], [0], [0], [1], [0, 0, 1, 1], [], []>} : vector<8x32xf32>, vector<32x128xf32>, vector<8x128xf32> -> vector<8x128xf32>
    %140 = arith.index_cast %138 : i32 to index
    %c0_38 = arith.constant 0 : index
    %141 = vector.load %arg12[%140, %c0_38] : memref<64x128xf32, #tpu.memory_space<vmem>>, vector<8x128xf32>
    %142 = arith.addf %139, %141 : vector<8x128xf32>
    %143 = math.tanh %142 : vector<8x128xf32>
    %144 = arith.negf %142 : vector<8x128xf32>
    %145 = math.exp %144 : vector<8x128xf32>
    %cst_39 = arith.constant 1.000000e+00 : f32
    %146 = vector.broadcast %cst_39 : f32 to vector<8x128xf32>
    %147 = arith.addf %146, %145 : vector<8x128xf32>
    %148 = arith.divf %146, %147 : vector<8x128xf32>
    %149 = arith.select %5, %143, %148 : vector<8x128xi1>, vector<8x128xf32>
    %150 = vector.extract_strided_slice %149 {offsets = [0, 0], sizes = [8, 32], strides = [1, 1]} : vector<8x128xf32> to vector<8x32xf32>
    %151 = vector.extract_strided_slice %149 {offsets = [0, 32], sizes = [8, 32], strides = [1, 1]} : vector<8x128xf32> to vector<8x32xf32>
    %152 = vector.extract_strided_slice %149 {offsets = [0, 64], sizes = [8, 32], strides = [1, 1]} : vector<8x128xf32> to vector<8x32xf32>
    %153 = vector.extract_strided_slice %149 {offsets = [0, 96], sizes = [8, 32], strides = [1, 1]} : vector<8x128xf32> to vector<8x32xf32>
    %154 = arith.mulf %151, %132 : vector<8x32xf32>
    %155 = arith.mulf %150, %152 : vector<8x32xf32>
    %156 = arith.addf %154, %155 : vector<8x32xf32>
    %157 = math.tanh %156 : vector<8x32xf32>
    %158 = arith.mulf %153, %157 : vector<8x32xf32>
    %159 = arith.index_cast %138 : i32 to index
    %c0_40 = arith.constant 0 : index
    %160 = vector.load %arg11[%159, %c0_40] : memref<64x32xf32, #tpu.memory_space<vmem>>, vector<8x32xf32>
    tpu.vector_store %arg11[%159, %c0_40], %158 {strides = array<i32>} : memref<64x32xf32, #tpu.memory_space<vmem>>, vector<8x32xf32>,
    %c6_i32 = arith.constant 6 : i32
    %c8_i32_41 = arith.constant 8 : i32
    %161 = arith.muli %c6_i32, %c8_i32_41 : i32
    %162 = tpu.assume_multiple %161, 8 : i32
    %cst_42 = arith.constant dense<0.000000e+00> : vector<8x128xf32>
    %163 = tpu.matmul %158, %7, %cst_42 {dimension_numbers = #tpu.dot_dimension_numbers<[1], [0], [0], [1], [0, 0, 1, 1], [], []>} : vector<8x32xf32>, vector<32x128xf32>, vector<8x128xf32> -> vector<8x128xf32>
    %164 = arith.index_cast %162 : i32 to index
    %c0_43 = arith.constant 0 : index
    %165 = vector.load %arg12[%164, %c0_43] : memref<64x128xf32, #tpu.memory_space<vmem>>, vector<8x128xf32>
    %166 = arith.addf %163, %165 : vector<8x128xf32>
    %167 = math.tanh %166 : vector<8x128xf32>
    %168 = arith.negf %166 : vector<8x128xf32>
    %169 = math.exp %168 : vector<8x128xf32>
    %cst_44 = arith.constant 1.000000e+00 : f32
    %170 = vector.broadcast %cst_44 : f32 to vector<8x128xf32>
    %171 = arith.addf %170, %169 : vector<8x128xf32>
    %172 = arith.divf %170, %171 : vector<8x128xf32>
    %173 = arith.select %5, %167, %172 : vector<8x128xi1>, vector<8x128xf32>
    %174 = vector.extract_strided_slice %173 {offsets = [0, 0], sizes = [8, 32], strides = [1, 1]} : vector<8x128xf32> to vector<8x32xf32>
    %175 = vector.extract_strided_slice %173 {offsets = [0, 32], sizes = [8, 32], strides = [1, 1]} : vector<8x128xf32> to vector<8x32xf32>
    %176 = vector.extract_strided_slice %173 {offsets = [0, 64], sizes = [8, 32], strides = [1, 1]} : vector<8x128xf32> to vector<8x32xf32>
    %177 = vector.extract_strided_slice %173 {offsets = [0, 96], sizes = [8, 32], strides = [1, 1]} : vector<8x128xf32> to vector<8x32xf32>
    %178 = arith.mulf %175, %156 : vector<8x32xf32>
    %179 = arith.mulf %174, %176 : vector<8x32xf32>
    %180 = arith.addf %178, %179 : vector<8x32xf32>
    %181 = math.tanh %180 : vector<8x32xf32>
    %182 = arith.mulf %177, %181 : vector<8x32xf32>
    %183 = arith.index_cast %162 : i32 to index
    %c0_45 = arith.constant 0 : index
    %184 = vector.load %arg11[%183, %c0_45] : memref<64x32xf32, #tpu.memory_space<vmem>>, vector<8x32xf32>
    tpu.vector_store %arg11[%183, %c0_45], %182 {strides = array<i32>} : memref<64x32xf32, #tpu.memory_space<vmem>>, vector<8x32xf32>,
    %c7_i32 = arith.constant 7 : i32
    %c8_i32_46 = arith.constant 8 : i32
    %185 = arith.muli %c7_i32, %c8_i32_46 : i32
    %186 = tpu.assume_multiple %185, 8 : i32
    %cst_47 = arith.constant dense<0.000000e+00> : vector<8x128xf32>
    %187 = tpu.matmul %182, %7, %cst_47 {dimension_numbers = #tpu.dot_dimension_numbers<[1], [0], [0], [1], [0, 0, 1, 1], [], []>} : vector<8x32xf32>, vector<32x128xf32>, vector<8x128xf32> -> vector<8x128xf32>
    %188 = arith.index_cast %186 : i32 to index
    %c0_48 = arith.constant 0 : index
    %189 = vector.load %arg12[%188, %c0_48] : memref<64x128xf32, #tpu.memory_space<vmem>>, vector<8x128xf32>
    %190 = arith.addf %187, %189 : vector<8x128xf32>
    %191 = math.tanh %190 : vector<8x128xf32>
    %192 = arith.negf %190 : vector<8x128xf32>
    %193 = math.exp %192 : vector<8x128xf32>
    %cst_49 = arith.constant 1.000000e+00 : f32
    %194 = vector.broadcast %cst_49 : f32 to vector<8x128xf32>
    %195 = arith.addf %194, %193 : vector<8x128xf32>
    %196 = arith.divf %194, %195 : vector<8x128xf32>
    %197 = arith.select %5, %191, %196 : vector<8x128xi1>, vector<8x128xf32>
    %198 = vector.extract_strided_slice %197 {offsets = [0, 0], sizes = [8, 32], strides = [1, 1]} : vector<8x128xf32> to vector<8x32xf32>
    %199 = vector.extract_strided_slice %197 {offsets = [0, 32], sizes = [8, 32], strides = [1, 1]} : vector<8x128xf32> to vector<8x32xf32>
    %200 = vector.extract_strided_slice %197 {offsets = [0, 64], sizes = [8, 32], strides = [1, 1]} : vector<8x128xf32> to vector<8x32xf32>
    %201 = vector.extract_strided_slice %197 {offsets = [0, 96], sizes = [8, 32], strides = [1, 1]} : vector<8x128xf32> to vector<8x32xf32>
    %202 = arith.mulf %199, %180 : vector<8x32xf32>
    %203 = arith.mulf %198, %200 : vector<8x32xf32>
    %204 = arith.addf %202, %203 : vector<8x32xf32>
    %205 = math.tanh %204 : vector<8x32xf32>
    %206 = arith.mulf %201, %205 : vector<8x32xf32>
    %207 = arith.index_cast %186 : i32 to index
    %c0_50 = arith.constant 0 : index
    %208 = vector.load %arg11[%207, %c0_50] : memref<64x32xf32, #tpu.memory_space<vmem>>, vector<8x32xf32>
    tpu.vector_store %arg11[%207, %c0_50], %206 {strides = array<i32>} : memref<64x32xf32, #tpu.memory_space<vmem>>, vector<8x32xf32>,
    %c8_i32_51 = arith.constant 8 : i32
    %c0_52 = arith.constant 0 : index
    %c0_53 = arith.constant 0 : index
    %209 = vector.load %arg5[%c0_52, %c0_53] : memref<32x128xf32, #tpu.memory_space<vmem>>, vector<32x128xf32>
    %c0_54 = arith.constant 0 : index
    %c0_55 = arith.constant 0 : index
    %210 = vector.load %arg6[%c0_54, %c0_55] : memref<32x128xf32, #tpu.memory_space<vmem>>, vector<32x128xf32>
    %c0_56 = arith.constant 0 : index
    %c0_57 = arith.constant 0 : index
    %211 = vector.load %arg7[%c0_56, %c0_57] : memref<1x128xf32, #tpu.memory_space<vmem>>, vector<1x128xf32>
    %c0_58 = arith.constant 0 : index
    %c0_59 = arith.constant 0 : index
    %212 = vector.load %arg11[%c0_58, %c0_59] : memref<64x32xf32, #tpu.memory_space<vmem>>, vector<64x32xf32>
    %cst_60 = arith.constant dense<0.000000e+00> : vector<64x128xf32>
    %213 = tpu.matmul %212, %209, %cst_60 {dimension_numbers = #tpu.dot_dimension_numbers<[1], [0], [0], [1], [0, 0, 1, 1], [], []>} : vector<64x32xf32>, vector<32x128xf32>, vector<64x128xf32> -> vector<64x128xf32>
    %214 = vector.broadcast %211 : vector<1x128xf32> to vector<64x128xf32>
    %215 = arith.addf %213, %214 : vector<64x128xf32>
    %c0_61 = arith.constant 0 : index
    %c0_62 = arith.constant 0 : index
    %216 = vector.load %arg12[%c0_61, %c0_62] : memref<64x128xf32, #tpu.memory_space<vmem>>, vector<64x128xf32>
    tpu.vector_store %arg12[%c0_61, %c0_62], %215 {strides = array<i32>} : memref<64x128xf32, #tpu.memory_space<vmem>>, vector<64x128xf32>,
    %cst_63 = arith.constant 0.000000e+00 : f32
    %217 = vector.broadcast %cst_63 : f32 to vector<8x32xf32>
    %cst_64 = arith.constant 0.000000e+00 : f32
    %218 = vector.broadcast %cst_64 : f32 to vector<8x32xf32>
    %c0_i32_65 = arith.constant 0 : i32
    %c8_i32_66 = arith.constant 8 : i32
    %219 = arith.muli %c0_i32_65, %c8_i32_66 : i32
    %220 = tpu.assume_multiple %219, 8 : i32
    %cst_67 = arith.constant dense<0.000000e+00> : vector<8x128xf32>
    %221 = tpu.matmul %217, %210, %cst_67 {dimension_numbers = #tpu.dot_dimension_numbers<[1], [0], [0], [1], [0, 0, 1, 1], [], []>} : vector<8x32xf32>, vector<32x128xf32>, vector<8x128xf32> -> vector<8x128xf32>
    %222 = arith.index_cast %220 : i32 to index
    %c0_68 = arith.constant 0 : index
    %223 = vector.load %arg12[%222, %c0_68] : memref<64x128xf32, #tpu.memory_space<vmem>>, vector<8x128xf32>
    %224 = arith.addf %221, %223 : vector<8x128xf32>
    %225 = math.tanh %224 : vector<8x128xf32>
    %226 = arith.negf %224 : vector<8x128xf32>
    %227 = math.exp %226 : vector<8x128xf32>
    %cst_69 = arith.constant 1.000000e+00 : f32
    %228 = vector.broadcast %cst_69 : f32 to vector<8x128xf32>
    %229 = arith.addf %228, %227 : vector<8x128xf32>
    %230 = arith.divf %228, %229 : vector<8x128xf32>
    %231 = arith.select %5, %225, %230 : vector<8x128xi1>, vector<8x128xf32>
    %232 = vector.extract_strided_slice %231 {offsets = [0, 0], sizes = [8, 32], strides = [1, 1]} : vector<8x128xf32> to vector<8x32xf32>
    %233 = vector.extract_strided_slice %231 {offsets = [0, 32], sizes = [8, 32], strides = [1, 1]} : vector<8x128xf32> to vector<8x32xf32>
    %234 = vector.extract_strided_slice %231 {offsets = [0, 64], sizes = [8, 32], strides = [1, 1]} : vector<8x128xf32> to vector<8x32xf32>
    %235 = vector.extract_strided_slice %231 {offsets = [0, 96], sizes = [8, 32], strides = [1, 1]} : vector<8x128xf32> to vector<8x32xf32>
    %236 = arith.mulf %233, %218 : vector<8x32xf32>
    %237 = arith.mulf %232, %234 : vector<8x32xf32>
    %238 = arith.addf %236, %237 : vector<8x32xf32>
    %239 = math.tanh %238 : vector<8x32xf32>
    %240 = arith.mulf %235, %239 : vector<8x32xf32>
    %241 = arith.index_cast %220 : i32 to index
    %c0_70 = arith.constant 0 : index
    %242 = vector.load %arg11[%241, %c0_70] : memref<64x32xf32, #tpu.memory_space<vmem>>, vector<8x32xf32>
    tpu.vector_store %arg11[%241, %c0_70], %240 {strides = array<i32>} : memref<64x32xf32, #tpu.memory_space<vmem>>, vector<8x32xf32>,
    %c1_i32_71 = arith.constant 1 : i32
    %c8_i32_72 = arith.constant 8 : i32
    %243 = arith.muli %c1_i32_71, %c8_i32_72 : i32
    %244 = tpu.assume_multiple %243, 8 : i32
    %cst_73 = arith.constant dense<0.000000e+00> : vector<8x128xf32>
    %245 = tpu.matmul %240, %210, %cst_73 {dimension_numbers = #tpu.dot_dimension_numbers<[1], [0], [0], [1], [0, 0, 1, 1], [], []>} : vector<8x32xf32>, vector<32x128xf32>, vector<8x128xf32> -> vector<8x128xf32>
    %246 = arith.index_cast %244 : i32 to index
    %c0_74 = arith.constant 0 : index
    %247 = vector.load %arg12[%246, %c0_74] : memref<64x128xf32, #tpu.memory_space<vmem>>, vector<8x128xf32>
    %248 = arith.addf %245, %247 : vector<8x128xf32>
    %249 = math.tanh %248 : vector<8x128xf32>
    %250 = arith.negf %248 : vector<8x128xf32>
    %251 = math.exp %250 : vector<8x128xf32>
    %cst_75 = arith.constant 1.000000e+00 : f32
    %252 = vector.broadcast %cst_75 : f32 to vector<8x128xf32>
    %253 = arith.addf %252, %251 : vector<8x128xf32>
    %254 = arith.divf %252, %253 : vector<8x128xf32>
    %255 = arith.select %5, %249, %254 : vector<8x128xi1>, vector<8x128xf32>
    %256 = vector.extract_strided_slice %255 {offsets = [0, 0], sizes = [8, 32], strides = [1, 1]} : vector<8x128xf32> to vector<8x32xf32>
    %257 = vector.extract_strided_slice %255 {offsets = [0, 32], sizes = [8, 32], strides = [1, 1]} : vector<8x128xf32> to vector<8x32xf32>
    %258 = vector.extract_strided_slice %255 {offsets = [0, 64], sizes = [8, 32], strides = [1, 1]} : vector<8x128xf32> to vector<8x32xf32>
    %259 = vector.extract_strided_slice %255 {offsets = [0, 96], sizes = [8, 32], strides = [1, 1]} : vector<8x128xf32> to vector<8x32xf32>
    %260 = arith.mulf %257, %238 : vector<8x32xf32>
    %261 = arith.mulf %256, %258 : vector<8x32xf32>
    %262 = arith.addf %260, %261 : vector<8x32xf32>
    %263 = math.tanh %262 : vector<8x32xf32>
    %264 = arith.mulf %259, %263 : vector<8x32xf32>
    %265 = arith.index_cast %244 : i32 to index
    %c0_76 = arith.constant 0 : index
    %266 = vector.load %arg11[%265, %c0_76] : memref<64x32xf32, #tpu.memory_space<vmem>>, vector<8x32xf32>
    tpu.vector_store %arg11[%265, %c0_76], %264 {strides = array<i32>} : memref<64x32xf32, #tpu.memory_space<vmem>>, vector<8x32xf32>,
    %c2_i32_77 = arith.constant 2 : i32
    %c8_i32_78 = arith.constant 8 : i32
    %267 = arith.muli %c2_i32_77, %c8_i32_78 : i32
    %268 = tpu.assume_multiple %267, 8 : i32
    %cst_79 = arith.constant dense<0.000000e+00> : vector<8x128xf32>
    %269 = tpu.matmul %264, %210, %cst_79 {dimension_numbers = #tpu.dot_dimension_numbers<[1], [0], [0], [1], [0, 0, 1, 1], [], []>} : vector<8x32xf32>, vector<32x128xf32>, vector<8x128xf32> -> vector<8x128xf32>
    %270 = arith.index_cast %268 : i32 to index
    %c0_80 = arith.constant 0 : index
    %271 = vector.load %arg12[%270, %c0_80] : memref<64x128xf32, #tpu.memory_space<vmem>>, vector<8x128xf32>
    %272 = arith.addf %269, %271 : vector<8x128xf32>
    %273 = math.tanh %272 : vector<8x128xf32>
    %274 = arith.negf %272 : vector<8x128xf32>
    %275 = math.exp %274 : vector<8x128xf32>
    %cst_81 = arith.constant 1.000000e+00 : f32
    %276 = vector.broadcast %cst_81 : f32 to vector<8x128xf32>
    %277 = arith.addf %276, %275 : vector<8x128xf32>
    %278 = arith.divf %276, %277 : vector<8x128xf32>
    %279 = arith.select %5, %273, %278 : vector<8x128xi1>, vector<8x128xf32>
    %280 = vector.extract_strided_slice %279 {offsets = [0, 0], sizes = [8, 32], strides = [1, 1]} : vector<8x128xf32> to vector<8x32xf32>
    %281 = vector.extract_strided_slice %279 {offsets = [0, 32], sizes = [8, 32], strides = [1, 1]} : vector<8x128xf32> to vector<8x32xf32>
    %282 = vector.extract_strided_slice %279 {offsets = [0, 64], sizes = [8, 32], strides = [1, 1]} : vector<8x128xf32> to vector<8x32xf32>
    %283 = vector.extract_strided_slice %279 {offsets = [0, 96], sizes = [8, 32], strides = [1, 1]} : vector<8x128xf32> to vector<8x32xf32>
    %284 = arith.mulf %281, %262 : vector<8x32xf32>
    %285 = arith.mulf %280, %282 : vector<8x32xf32>
    %286 = arith.addf %284, %285 : vector<8x32xf32>
    %287 = math.tanh %286 : vector<8x32xf32>
    %288 = arith.mulf %283, %287 : vector<8x32xf32>
    %289 = arith.index_cast %268 : i32 to index
    %c0_82 = arith.constant 0 : index
    %290 = vector.load %arg11[%289, %c0_82] : memref<64x32xf32, #tpu.memory_space<vmem>>, vector<8x32xf32>
    tpu.vector_store %arg11[%289, %c0_82], %288 {strides = array<i32>} : memref<64x32xf32, #tpu.memory_space<vmem>>, vector<8x32xf32>,
    %c3_i32_83 = arith.constant 3 : i32
    %c8_i32_84 = arith.constant 8 : i32
    %291 = arith.muli %c3_i32_83, %c8_i32_84 : i32
    %292 = tpu.assume_multiple %291, 8 : i32
    %cst_85 = arith.constant dense<0.000000e+00> : vector<8x128xf32>
    %293 = tpu.matmul %288, %210, %cst_85 {dimension_numbers = #tpu.dot_dimension_numbers<[1], [0], [0], [1], [0, 0, 1, 1], [], []>} : vector<8x32xf32>, vector<32x128xf32>, vector<8x128xf32> -> vector<8x128xf32>
    %294 = arith.index_cast %292 : i32 to index
    %c0_86 = arith.constant 0 : index
    %295 = vector.load %arg12[%294, %c0_86] : memref<64x128xf32, #tpu.memory_space<vmem>>, vector<8x128xf32>
    %296 = arith.addf %293, %295 : vector<8x128xf32>
    %297 = math.tanh %296 : vector<8x128xf32>
    %298 = arith.negf %296 : vector<8x128xf32>
    %299 = math.exp %298 : vector<8x128xf32>
    %cst_87 = arith.constant 1.000000e+00 : f32
    %300 = vector.broadcast %cst_87 : f32 to vector<8x128xf32>
    %301 = arith.addf %300, %299 : vector<8x128xf32>
    %302 = arith.divf %300, %301 : vector<8x128xf32>
    %303 = arith.select %5, %297, %302 : vector<8x128xi1>, vector<8x128xf32>
    %304 = vector.extract_strided_slice %303 {offsets = [0, 0], sizes = [8, 32], strides = [1, 1]} : vector<8x128xf32> to vector<8x32xf32>
    %305 = vector.extract_strided_slice %303 {offsets = [0, 32], sizes = [8, 32], strides = [1, 1]} : vector<8x128xf32> to vector<8x32xf32>
    %306 = vector.extract_strided_slice %303 {offsets = [0, 64], sizes = [8, 32], strides = [1, 1]} : vector<8x128xf32> to vector<8x32xf32>
    %307 = vector.extract_strided_slice %303 {offsets = [0, 96], sizes = [8, 32], strides = [1, 1]} : vector<8x128xf32> to vector<8x32xf32>
    %308 = arith.mulf %305, %286 : vector<8x32xf32>
    %309 = arith.mulf %304, %306 : vector<8x32xf32>
    %310 = arith.addf %308, %309 : vector<8x32xf32>
    %311 = math.tanh %310 : vector<8x32xf32>
    %312 = arith.mulf %307, %311 : vector<8x32xf32>
    %313 = arith.index_cast %292 : i32 to index
    %c0_88 = arith.constant 0 : index
    %314 = vector.load %arg11[%313, %c0_88] : memref<64x32xf32, #tpu.memory_space<vmem>>, vector<8x32xf32>
    tpu.vector_store %arg11[%313, %c0_88], %312 {strides = array<i32>} : memref<64x32xf32, #tpu.memory_space<vmem>>, vector<8x32xf32>,
    %c4_i32_89 = arith.constant 4 : i32
    %c8_i32_90 = arith.constant 8 : i32
    %315 = arith.muli %c4_i32_89, %c8_i32_90 : i32
    %316 = tpu.assume_multiple %315, 8 : i32
    %cst_91 = arith.constant dense<0.000000e+00> : vector<8x128xf32>
    %317 = tpu.matmul %312, %210, %cst_91 {dimension_numbers = #tpu.dot_dimension_numbers<[1], [0], [0], [1], [0, 0, 1, 1], [], []>} : vector<8x32xf32>, vector<32x128xf32>, vector<8x128xf32> -> vector<8x128xf32>
    %318 = arith.index_cast %316 : i32 to index
    %c0_92 = arith.constant 0 : index
    %319 = vector.load %arg12[%318, %c0_92] : memref<64x128xf32, #tpu.memory_space<vmem>>, vector<8x128xf32>
    %320 = arith.addf %317, %319 : vector<8x128xf32>
    %321 = math.tanh %320 : vector<8x128xf32>
    %322 = arith.negf %320 : vector<8x128xf32>
    %323 = math.exp %322 : vector<8x128xf32>
    %cst_93 = arith.constant 1.000000e+00 : f32
    %324 = vector.broadcast %cst_93 : f32 to vector<8x128xf32>
    %325 = arith.addf %324, %323 : vector<8x128xf32>
    %326 = arith.divf %324, %325 : vector<8x128xf32>
    %327 = arith.select %5, %321, %326 : vector<8x128xi1>, vector<8x128xf32>
    %328 = vector.extract_strided_slice %327 {offsets = [0, 0], sizes = [8, 32], strides = [1, 1]} : vector<8x128xf32> to vector<8x32xf32>
    %329 = vector.extract_strided_slice %327 {offsets = [0, 32], sizes = [8, 32], strides = [1, 1]} : vector<8x128xf32> to vector<8x32xf32>
    %330 = vector.extract_strided_slice %327 {offsets = [0, 64], sizes = [8, 32], strides = [1, 1]} : vector<8x128xf32> to vector<8x32xf32>
    %331 = vector.extract_strided_slice %327 {offsets = [0, 96], sizes = [8, 32], strides = [1, 1]} : vector<8x128xf32> to vector<8x32xf32>
    %332 = arith.mulf %329, %310 : vector<8x32xf32>
    %333 = arith.mulf %328, %330 : vector<8x32xf32>
    %334 = arith.addf %332, %333 : vector<8x32xf32>
    %335 = math.tanh %334 : vector<8x32xf32>
    %336 = arith.mulf %331, %335 : vector<8x32xf32>
    %337 = arith.index_cast %316 : i32 to index
    %c0_94 = arith.constant 0 : index
    %338 = vector.load %arg11[%337, %c0_94] : memref<64x32xf32, #tpu.memory_space<vmem>>, vector<8x32xf32>
    tpu.vector_store %arg11[%337, %c0_94], %336 {strides = array<i32>} : memref<64x32xf32, #tpu.memory_space<vmem>>, vector<8x32xf32>,
    %c5_i32_95 = arith.constant 5 : i32
    %c8_i32_96 = arith.constant 8 : i32
    %339 = arith.muli %c5_i32_95, %c8_i32_96 : i32
    %340 = tpu.assume_multiple %339, 8 : i32
    %cst_97 = arith.constant dense<0.000000e+00> : vector<8x128xf32>
    %341 = tpu.matmul %336, %210, %cst_97 {dimension_numbers = #tpu.dot_dimension_numbers<[1], [0], [0], [1], [0, 0, 1, 1], [], []>} : vector<8x32xf32>, vector<32x128xf32>, vector<8x128xf32> -> vector<8x128xf32>
    %342 = arith.index_cast %340 : i32 to index
    %c0_98 = arith.constant 0 : index
    %343 = vector.load %arg12[%342, %c0_98] : memref<64x128xf32, #tpu.memory_space<vmem>>, vector<8x128xf32>
    %344 = arith.addf %341, %343 : vector<8x128xf32>
    %345 = math.tanh %344 : vector<8x128xf32>
    %346 = arith.negf %344 : vector<8x128xf32>
    %347 = math.exp %346 : vector<8x128xf32>
    %cst_99 = arith.constant 1.000000e+00 : f32
    %348 = vector.broadcast %cst_99 : f32 to vector<8x128xf32>
    %349 = arith.addf %348, %347 : vector<8x128xf32>
    %350 = arith.divf %348, %349 : vector<8x128xf32>
    %351 = arith.select %5, %345, %350 : vector<8x128xi1>, vector<8x128xf32>
    %352 = vector.extract_strided_slice %351 {offsets = [0, 0], sizes = [8, 32], strides = [1, 1]} : vector<8x128xf32> to vector<8x32xf32>
    %353 = vector.extract_strided_slice %351 {offsets = [0, 32], sizes = [8, 32], strides = [1, 1]} : vector<8x128xf32> to vector<8x32xf32>
    %354 = vector.extract_strided_slice %351 {offsets = [0, 64], sizes = [8, 32], strides = [1, 1]} : vector<8x128xf32> to vector<8x32xf32>
    %355 = vector.extract_strided_slice %351 {offsets = [0, 96], sizes = [8, 32], strides = [1, 1]} : vector<8x128xf32> to vector<8x32xf32>
    %356 = arith.mulf %353, %334 : vector<8x32xf32>
    %357 = arith.mulf %352, %354 : vector<8x32xf32>
    %358 = arith.addf %356, %357 : vector<8x32xf32>
    %359 = math.tanh %358 : vector<8x32xf32>
    %360 = arith.mulf %355, %359 : vector<8x32xf32>
    %361 = arith.index_cast %340 : i32 to index
    %c0_100 = arith.constant 0 : index
    %362 = vector.load %arg11[%361, %c0_100] : memref<64x32xf32, #tpu.memory_space<vmem>>, vector<8x32xf32>
    tpu.vector_store %arg11[%361, %c0_100], %360 {strides = array<i32>} : memref<64x32xf32, #tpu.memory_space<vmem>>, vector<8x32xf32>,
    %c6_i32_101 = arith.constant 6 : i32
    %c8_i32_102 = arith.constant 8 : i32
    %363 = arith.muli %c6_i32_101, %c8_i32_102 : i32
    %364 = tpu.assume_multiple %363, 8 : i32
    %cst_103 = arith.constant dense<0.000000e+00> : vector<8x128xf32>
    %365 = tpu.matmul %360, %210, %cst_103 {dimension_numbers = #tpu.dot_dimension_numbers<[1], [0], [0], [1], [0, 0, 1, 1], [], []>} : vector<8x32xf32>, vector<32x128xf32>, vector<8x128xf32> -> vector<8x128xf32>
    %366 = arith.index_cast %364 : i32 to index
    %c0_104 = arith.constant 0 : index
    %367 = vector.load %arg12[%366, %c0_104] : memref<64x128xf32, #tpu.memory_space<vmem>>, vector<8x128xf32>
    %368 = arith.addf %365, %367 : vector<8x128xf32>
    %369 = math.tanh %368 : vector<8x128xf32>
    %370 = arith.negf %368 : vector<8x128xf32>
    %371 = math.exp %370 : vector<8x128xf32>
    %cst_105 = arith.constant 1.000000e+00 : f32
    %372 = vector.broadcast %cst_105 : f32 to vector<8x128xf32>
    %373 = arith.addf %372, %371 : vector<8x128xf32>
    %374 = arith.divf %372, %373 : vector<8x128xf32>
    %375 = arith.select %5, %369, %374 : vector<8x128xi1>, vector<8x128xf32>
    %376 = vector.extract_strided_slice %375 {offsets = [0, 0], sizes = [8, 32], strides = [1, 1]} : vector<8x128xf32> to vector<8x32xf32>
    %377 = vector.extract_strided_slice %375 {offsets = [0, 32], sizes = [8, 32], strides = [1, 1]} : vector<8x128xf32> to vector<8x32xf32>
    %378 = vector.extract_strided_slice %375 {offsets = [0, 64], sizes = [8, 32], strides = [1, 1]} : vector<8x128xf32> to vector<8x32xf32>
    %379 = vector.extract_strided_slice %375 {offsets = [0, 96], sizes = [8, 32], strides = [1, 1]} : vector<8x128xf32> to vector<8x32xf32>
    %380 = arith.mulf %377, %358 : vector<8x32xf32>
    %381 = arith.mulf %376, %378 : vector<8x32xf32>
    %382 = arith.addf %380, %381 : vector<8x32xf32>
    %383 = math.tanh %382 : vector<8x32xf32>
    %384 = arith.mulf %379, %383 : vector<8x32xf32>
    %385 = arith.index_cast %364 : i32 to index
    %c0_106 = arith.constant 0 : index
    %386 = vector.load %arg11[%385, %c0_106] : memref<64x32xf32, #tpu.memory_space<vmem>>, vector<8x32xf32>
    tpu.vector_store %arg11[%385, %c0_106], %384 {strides = array<i32>} : memref<64x32xf32, #tpu.memory_space<vmem>>, vector<8x32xf32>,
    %c7_i32_107 = arith.constant 7 : i32
    %c8_i32_108 = arith.constant 8 : i32
    %387 = arith.muli %c7_i32_107, %c8_i32_108 : i32
    %388 = tpu.assume_multiple %387, 8 : i32
    %cst_109 = arith.constant dense<0.000000e+00> : vector<8x128xf32>
    %389 = tpu.matmul %384, %210, %cst_109 {dimension_numbers = #tpu.dot_dimension_numbers<[1], [0], [0], [1], [0, 0, 1, 1], [], []>} : vector<8x32xf32>, vector<32x128xf32>, vector<8x128xf32> -> vector<8x128xf32>
    %390 = arith.index_cast %388 : i32 to index
    %c0_110 = arith.constant 0 : index
    %391 = vector.load %arg12[%390, %c0_110] : memref<64x128xf32, #tpu.memory_space<vmem>>, vector<8x128xf32>
    %392 = arith.addf %389, %391 : vector<8x128xf32>
    %393 = math.tanh %392 : vector<8x128xf32>
    %394 = arith.negf %392 : vector<8x128xf32>
    %395 = math.exp %394 : vector<8x128xf32>
    %cst_111 = arith.constant 1.000000e+00 : f32
    %396 = vector.broadcast %cst_111 : f32 to vector<8x128xf32>
    %397 = arith.addf %396, %395 : vector<8x128xf32>
    %398 = arith.divf %396, %397 : vector<8x128xf32>
    %399 = arith.select %5, %393, %398 : vector<8x128xi1>, vector<8x128xf32>
    %400 = vector.extract_strided_slice %399 {offsets = [0, 0], sizes = [8, 32], strides = [1, 1]} : vector<8x128xf32> to vector<8x32xf32>
    %401 = vector.extract_strided_slice %399 {offsets = [0, 32], sizes = [8, 32], strides = [1, 1]} : vector<8x128xf32> to vector<8x32xf32>
    %402 = vector.extract_strided_slice %399 {offsets = [0, 64], sizes = [8, 32], strides = [1, 1]} : vector<8x128xf32> to vector<8x32xf32>
    %403 = vector.extract_strided_slice %399 {offsets = [0, 96], sizes = [8, 32], strides = [1, 1]} : vector<8x128xf32> to vector<8x32xf32>
    %404 = arith.mulf %401, %382 : vector<8x32xf32>
    %405 = arith.mulf %400, %402 : vector<8x32xf32>
    %406 = arith.addf %404, %405 : vector<8x32xf32>
    %407 = math.tanh %406 : vector<8x32xf32>
    %408 = arith.mulf %403, %407 : vector<8x32xf32>
    %409 = arith.index_cast %388 : i32 to index
    %c0_112 = arith.constant 0 : index
    %410 = vector.load %arg11[%409, %c0_112] : memref<64x32xf32, #tpu.memory_space<vmem>>, vector<8x32xf32>
    tpu.vector_store %arg11[%409, %c0_112], %408 {strides = array<i32>} : memref<64x32xf32, #tpu.memory_space<vmem>>, vector<8x32xf32>,
    %c8_i32_113 = arith.constant 8 : i32
    %c0_114 = arith.constant 0 : index
    %c0_115 = arith.constant 0 : index
    %411 = vector.load %arg11[%c0_114, %c0_115] : memref<64x32xf32, #tpu.memory_space<vmem>>, vector<64x32xf32>
    %c0_116 = arith.constant 0 : index
    %c0_117 = arith.constant 0 : index
    %412 = vector.load %arg8[%c0_116, %c0_117] : memref<32x128xf32, #tpu.memory_space<vmem>>, vector<32x128xf32>
    %cst_118 = arith.constant dense<0.000000e+00> : vector<64x128xf32>
    %413 = tpu.matmul %411, %412, %cst_118 {dimension_numbers = #tpu.dot_dimension_numbers<[1], [0], [0], [1], [0, 0, 1, 1], [], []>} : vector<64x32xf32>, vector<32x128xf32>, vector<64x128xf32> -> vector<64x128xf32>
    %c0_119 = arith.constant 0 : index
    %c0_120 = arith.constant 0 : index
    %414 = vector.load %arg9[%c0_119, %c0_120] : memref<1x128xf32, #tpu.memory_space<vmem>>, vector<1x128xf32>
    %415 = vector.broadcast %414 : vector<1x128xf32> to vector<64x128xf32>
    %416 = arith.addf %413, %415 : vector<64x128xf32>
    %c0_121 = arith.constant 0 : index
    %c0_122 = arith.constant 0 : index
    %c0_123 = arith.constant 0 : index
    %417 = vector.load %arg10[%c0_121, %c0_122, %c0_123] : memref<1x64x128xf32, #tpu.memory_space<vmem>>, vector<1x64x128xf32>
    %418 = vector.shape_cast %417 : vector<1x64x128xf32> to vector<64x128xf32>
    %419 = vector.shape_cast %416 : vector<64x128xf32> to vector<1x64x128xf32>
    tpu.vector_store %arg10[%c0_121, %c0_122, %c0_123], %419 {strides = array<i32>} : memref<1x64x128xf32, #tpu.memory_space<vmem>>, vector<1x64x128xf32>,
    return
  }
  func.func @transform_0(%arg0: i32) -> (i32, i32, i32) {
    %c0_i32 = arith.constant 0 : i32
    %c0_i32_0 = arith.constant 0 : i32
    %c0_i32_1 = arith.constant 0 : i32
    return %arg0, %c0_i32, %c0_i32_0 : i32, i32, i32
  }
  func.func @transform_1(%arg0: i32) -> (i32, i32) {
    %c0_i32 = arith.constant 0 : i32
    %c0_i32_0 = arith.constant 0 : i32
    %c0_i32_1 = arith.constant 0 : i32
    return %c0_i32, %c0_i32_0 : i32, i32
  }
  func.func @transform_2(%arg0: i32) -> (i32, i32) {
    %c0_i32 = arith.constant 0 : i32
    %c0_i32_0 = arith.constant 0 : i32
    %c0_i32_1 = arith.constant 0 : i32
    return %c0_i32, %c0_i32_0 : i32, i32
  }
  func.func @transform_3(%arg0: i32) -> (i32, i32) {
    %c0_i32 = arith.constant 0 : i32
    %c0_i32_0 = arith.constant 0 : i32
    %c0_i32_1 = arith.constant 0 : i32
    return %c0_i32, %c0_i32_0 : i32, i32
  }
  func.func @transform_4(%arg0: i32) -> (i32, i32) {
    %c0_i32 = arith.constant 0 : i32
    %c0_i32_0 = arith.constant 0 : i32
    %c0_i32_1 = arith.constant 0 : i32
    return %c0_i32, %c0_i32_0 : i32, i32
  }
  func.func @transform_5(%arg0: i32) -> (i32, i32) {
    %c0_i32 = arith.constant 0 : i32
    %c0_i32_0 = arith.constant 0 : i32
    %c0_i32_1 = arith.constant 0 : i32
    return %c0_i32, %c0_i32_0 : i32, i32
  }
  func.func @transform_6(%arg0: i32) -> (i32, i32) {
    %c0_i32 = arith.constant 0 : i32
    %c0_i32_0 = arith.constant 0 : i32
    %c0_i32_1 = arith.constant 0 : i32
    return %c0_i32, %c0_i32_0 : i32, i32
  }
  func.func @transform_7(%arg0: i32) -> (i32, i32) {
    %c0_i32 = arith.constant 0 : i32
    %c0_i32_0 = arith.constant 0 : i32
    %c0_i32_1 = arith.constant 0 : i32
    return %c0_i32, %c0_i32_0 : i32, i32
  }
  func.func @transform_8(%arg0: i32) -> (i32, i32) {
    %c0_i32 = arith.constant 0 : i32
    %c0_i32_0 = arith.constant 0 : i32
    %c0_i32_1 = arith.constant 0 : i32
    return %c0_i32, %c0_i32_0 : i32, i32
  }
  func.func @transform_9(%arg0: i32) -> (i32, i32, i32) {
    %c0_i32 = arith.constant 0 : i32
    %c0_i32_0 = arith.constant 0 : i32
    %c0_i32_1 = arith.constant 0 : i32
    return %arg0, %c0_i32, %c0_i32_0 : i32, i32, i32
  }
}

</mosaic_0001>

<llo_original>
// kernel: tpu_custom_call.1
$region0: #{tpu_custom_call.1}
  #allocation0 [shape = 'u32[]', space=smem, size = 0x4, offset = 0x4, fixed_abs, tag = 'smem constant byte address 0x4 - core index']
  #allocation1 [shape = 'u32[72,128]{1,0:T(1,128)}', space=vmem, size = 0x9000, scoped, tag = 'internal scratch']
  #allocation2 [shape = 'f32[64,32]{1,0:T(8,128)}', space=vmem, size = 0x8000, scoped, tag = 'scratch operand']
  #allocation3 [shape = 'f32[64,128]{1,0:T(8,128)}', space=vmem, size = 0x8000, scoped, tag = 'scratch operand']
  %s0 = inlined_call_operand.vmem [shape: f32[1,64,4], index: 0, kind: input, shape index: {}]
  %s1 = inlined_call_operand.vmem [shape: f32[4,128], index: 1, kind: input, shape index: {}]
  %s2 = inlined_call_operand.vmem [shape: f32[32,128], index: 2, kind: input, shape index: {}]
  %s3 = inlined_call_operand.vmem [shape: f32[1,128], index: 3, kind: input, shape index: {}]
  %s4 = inlined_call_operand.vmem [shape: f32[32,128], index: 4, kind: input, shape index: {}]
  %s5 = inlined_call_operand.hbm [shape: f32[32,128], index: 5, kind: input, shape index: {}]
  %s6 = inlined_call_operand.vmem [shape: f32[1,128], index: 6, kind: input, shape index: {}]
  %s7 = inlined_call_operand.hbm [shape: f32[32,128], index: 7, kind: input, shape index: {}]
  %s8 = inlined_call_operand.vmem [shape: f32[1,128], index: 8, kind: input, shape index: {}]
  %s9 = inlined_call_operand.hbm [shape: f32[1,64,128], index: 9, kind: output, shape index: {}]
  %s10 = sld [smem:[#allocation0]]
  $region54: #{tpu_custom_call.1} parent=0
    _
  %s12 = ssub.s32 1, %s10
  %s13 = scalar_select 0, %s12, %s10
  $region1: #{tpu_custom_call.1} parent=0
    #allocation4 [shape = 'u8[16384]{0}', space=vmem, size = 0x4000, scoped, tag = 'input window, operand 5, single buffered']
    #allocation5 [shape = 's32[1]{0}', space=sflag, size = 0x4, scoped, tag = 'scoped memory for tpu_custom_call.1']
    #allocation6 [shape = 's32[1]{0}', space=sflag, size = 0x4, scoped, tag = 'scoped memory for tpu_custom_call.1']
    #allocation7 [shape = 'u8[16384]{0}', space=vmem, size = 0x4000, scoped, tag = 'input window, operand 7, single buffered']
    #allocation8 [shape = 's32[1]{0}', space=sflag, size = 0x4, scoped, tag = 'scoped memory for tpu_custom_call.1']
    #allocation9 [shape = 'u8[32768]{0}', space=vmem, size = 0x8000, scoped, tag = 'output window, operand 0, single buffered']
    %14 = vsyncpa [#allocation5], 0
    %15 = vsyncpa [#allocation8], 0
    %16 = vsyncpa [#allocation6], 0
    // Predicated region
    $region2: #{tpu_custom_call.1} parent=1 // pred_check
      _
    $region3: #{tpu_custom_call.1} parent=1 // pred_check_branch
      %18 = sbr.rel (0) target = $region5
    $region4: #{tpu_custom_call.1} parent=1 // pred_region
      _
    $region5: #{tpu_custom_call.1} parent=1 // pred_fallthru
      _
    // Predicated region
    $region6: #{tpu_custom_call.1} parent=1 // pred_check
      _
    $region7: #{tpu_custom_call.1} parent=1 // pred_check_branch
      %20 = sbr.rel (0) target = $region9
    $region8: #{tpu_custom_call.1} parent=1 // pred_region
      _
    $region9: #{tpu_custom_call.1} parent=1 // pred_fallthru
      _
    // Predicated region
    $region10: #{tpu_custom_call.1} parent=1 // pred_check
      _
    $region11: #{tpu_custom_call.1} parent=1 // pred_check_branch
      %22 = sbr.rel (0) target = $region13
    $region12: #{tpu_custom_call.1} parent=1 // pred_region
      _
    $region13: #{tpu_custom_call.1} parent=1 // pred_fallthru
      _
    // Predicated region
    $region14: #{tpu_custom_call.1} parent=1 // pred_check
      _
    $region15: #{tpu_custom_call.1} parent=1 // pred_check_branch
      %24 = sbr.rel (0) target = $region17
    $region16: #{tpu_custom_call.1} parent=1 // pred_region
      _
    $region17: #{tpu_custom_call.1} parent=1 // pred_fallthru
      _
    // Predicated region
    $region18: #{tpu_custom_call.1} parent=1 // pred_check
      _
    $region19: #{tpu_custom_call.1} parent=1 // pred_check_branch
      %26 = sbr.rel (0) target = $region21
    $region20: #{tpu_custom_call.1} parent=1 // pred_region
      _
    $region21: #{tpu_custom_call.1} parent=1 // pred_fallthru
      _
    // Predicated region
    $region22: #{tpu_custom_call.1} parent=1 // pred_check
      _
    $region23: #{tpu_custom_call.1} parent=1 // pred_check_branch
      %28 = sbr.rel (0) target = $region25
    $region24: #{tpu_custom_call.1} parent=1 // pred_region
      %30 = vsyncadd [#allocation5], 0
      %s31 = sshll.u32 %s5, 4
      %s32 = int_to_ptr.hbm [resolvable:$true] %s31
      %s33 = sshll.u32 [#allocation4], 4
      %s34 = int_to_ptr.vmem [resolvable:$true] %s33
      %39 = dma.hbm_to_vmem [thread:$0]  %s32, 512, %s34, [#allocation5], 128, 128, 8
    $region25: #{tpu_custom_call.1} parent=1 // pred_fallthru
      _
    // Predicated region
    $region26: #{tpu_custom_call.1} parent=1 // pred_check
      _
    $region27: #{tpu_custom_call.1} parent=1 // pred_check_branch
      %41 = sbr.rel (0) target = $region29
    $region28: #{tpu_custom_call.1} parent=1 // pred_region
      _
    $region29: #{tpu_custom_call.1} parent=1 // pred_fallthru
      _
    // Predicated region
    $region30: #{tpu_custom_call.1} parent=1 // pred_check
      _
    $region31: #{tpu_custom_call.1} parent=1 // pred_check_branch
      %43 = sbr.rel (0) target = $region33
    $region32: #{tpu_custom_call.1} parent=1 // pred_region
      %45 = vsyncadd [#allocation8], 0
      %s46 = sshll.u32 %s7, 4
      %s47 = int_to_ptr.hbm [resolvable:$true] %s46
      %s48 = sshll.u32 [#allocation7], 4
      %s49 = int_to_ptr.vmem [resolvable:$true] %s48
      %54 = dma.hbm_to_vmem [thread:$0]  %s47, 512, %s49, [#allocation8], 128, 128, 8
    $region33: #{tpu_custom_call.1} parent=1 // pred_fallthru
      _
    // Predicated region
    $region34: #{tpu_custom_call.1} parent=1 // pred_check
      _
    $region35: #{tpu_custom_call.1} parent=1 // pred_check_branch
      %56 = sbr.rel (0) target = $region37
    $region36: #{tpu_custom_call.1} parent=1 // pred_region
      _
    $region37: #{tpu_custom_call.1} parent=1 // pred_fallthru
      _
    // Predicated region
    $region38: #{tpu_custom_call.1} parent=1 // pred_check
      _
    $region39: #{tpu_custom_call.1} parent=1 // pred_check_branch
      %58 = sbr.rel (0) target = $region41
    $region40: #{tpu_custom_call.1} parent=1 // pred_region
      %60 = dma.done [#allocation5], 512
    $region41: #{tpu_custom_call.1} parent=1 // pred_fallthru
      _
    // Predicated region
    $region42: #{tpu_custom_call.1} parent=1 // pred_check
      _
    $region43: #{tpu_custom_call.1} parent=1 // pred_check_branch
      %62 = sbr.rel (0) target = $region45
    $region44: #{tpu_custom_call.1} parent=1 // pred_region
      %64 = dma.done [#allocation8], 512
    $region45: #{tpu_custom_call.1} parent=1 // pred_fallthru
      _
    %v65 = vlaneseq
    %v66 = vand.u32 %v65, 127
    %vm67 = vcmp.ge.s32.totalorder %v66, 64
    %vm68 = vcmp.lt.s32.totalorder %v66, 96
    %vm69 = vmand %vm67, %vm68
    %v70 = vld [vmem:[%s1] sm:$0xf]
    %v71 = vld [vmem:[%s2] sm:$0xff]
    %v72 = vld [vmem:[%s2 + $0x8] sm:$0xff]
    %v73 = vld [vmem:[%s2 + $0x10] sm:$0xff]
    %v74 = vld [vmem:[%s2 + $0x18] sm:$0xff]
    %v75 = vld [vmem:[%s3] sm:$0x1]
    %v76 = vld [vmem:[%s0] sm:$0xff]
    %v77 = vld [vmem:[%s0 + $0x8] sm:$0xff]
    %v78 = vld [vmem:[%s0 + $0x10] sm:$0xff]
    %v79 = vld [vmem:[%s0 + $0x18] sm:$0xff]
    %v80 = vld [vmem:[%s0 + $0x20] sm:$0xff]
    %v81 = vld [vmem:[%s0 + $0x28] sm:$0xff]
    %v82 = vld [vmem:[%s0 + $0x30] sm:$0xff]
    %v83 = vld [vmem:[%s0 + $0x38] sm:$0xff]
    %v85 = vperm.slane %v75, 0
    %vm87 = vcmask 31744
    %v89 = vsel %vm87, %v76, 0
    %v92 = vsel %vm87, %v77, 0
    %v95 = vsel %vm87, %v78, 0
    %v98 = vsel %vm87, %v79, 0
    %v101 = vsel %vm87, %v80, 0
    %v104 = vsel %vm87, %v81, 0
    %v107 = vsel %vm87, %v82, 0
    %v110 = vsel %vm87, %v83, 0
    %vm112 = vcmask 1043456
    %v114 = vsel %vm112, %v70, 0
    %116 = vmatpush.msra.mxu0 0.0
    %117 = vmatpush.msra.mxu0 0.0
    %118 = vmatpush.msra.mxu0 0.0
    %119 = vmatpush.msra.mxu0 0.0
    %120 = vmatpush.msra.mxu0 0.0
    %121 = vmatpush.msra.mxu0 0.0
    %122 = vmatpush.msra.mxu0 0.0
    %123 = vmatpush.msra.mxu0 0.0
    %124 = vmatpush.msra.mxu0 0.0
    %125 = vmatpush.msra.mxu0 0.0
    %126 = vmatpush.msra.mxu0 0.0
    %127 = vmatpush.msra.mxu0 0.0
    %128 = vmatpush.msra.mxu0 0.0
    %129 = vmatpush.msra.mxu0 0.0
    %130 = vmatpush.msra.mxu0 0.0
    %131 = vmatpush.msra.mxu0 %v114
    %132 = vmatmul.f32.gmra.mxu0 %v89
    %v133 = vpop.f32.mrf.mxu0
    %v134 = vadd.f32 %v85, %v133
    %135 = vmatmul.f32.gmra.mxu0 %v92
    %v136 = vpop.f32.mrf.mxu0
    %v137 = vadd.f32 %v85, %v136
    %138 = vmatmul.f32.gmra.mxu0 %v95
    %v139 = vpop.f32.mrf.mxu0
    %v140 = vadd.f32 %v85, %v139
    %141 = vmatmul.f32.gmra.mxu0 %v98
    %v142 = vpop.f32.mrf.mxu0
    %v143 = vadd.f32 %v85, %v142
    %144 = vmatmul.f32.gmra.mxu0 %v101
    %v145 = vpop.f32.mrf.mxu0
    %v146 = vadd.f32 %v85, %v145
    %147 = vmatmul.f32.gmra.mxu0 %v104
    %v148 = vpop.f32.mrf.mxu0
    %v149 = vadd.f32 %v85, %v148
    %150 = vmatmul.f32.gmra.mxu0 %v107
    %v151 = vpop.f32.mrf.mxu0
    %v152 = vadd.f32 %v85, %v151
    %153 = vmatmul.f32.gmra.mxu0 %v110
    %v154 = vpop.f32.mrf.mxu0
    %v155 = vadd.f32 %v85, %v154
    %156 = vdwg.mxu0
    %157 = vst [vmem:[#allocation3] sm:$0xff] %v134
    %158 = vst [vmem:[#allocation3 + $0x8] sm:$0xff] %v137
    %159 = vst [vmem:[#allocation3 + $0x10] sm:$0xff] %v140
    %160 = vst [vmem:[#allocation3 + $0x18] sm:$0xff] %v143
    %161 = vst [vmem:[#allocation3 + $0x20] sm:$0xff] %v146
    %162 = vst [vmem:[#allocation3 + $0x28] sm:$0xff] %v149
    %163 = vst [vmem:[#allocation3 + $0x30] sm:$0xff] %v152
    %164 = vst [vmem:[#allocation3 + $0x38] sm:$0xff] %v155
    %v165 = vld [vmem:[#allocation3] sm:$0xff]
    %vm166 = vcmask 261120
    %v168 = vsel %vm166, 0.0, 0
    %170 = vmatpush.msra.mxu0 0.0
    %171 = vmatpush.msra.mxu0 0.0
    %172 = vmatpush.msra.mxu0 0.0
    %173 = vmatpush.msra.mxu0 0.0
    %174 = vmatpush.msra.mxu0 0.0
    %175 = vmatpush.msra.mxu0 0.0
    %176 = vmatpush.msra.mxu0 0.0
    %177 = vmatpush.msra.mxu0 0.0
    %178 = vmatpush.msra.mxu0 0.0
    %179 = vmatpush.msra.mxu0 0.0
    %180 = vmatpush.msra.mxu0 0.0
    %181 = vmatpush.msra.mxu0 0.0
    %182 = vmatpush.msra.mxu0 %v74
    %183 = vmatpush.msra.mxu0 %v73
    %184 = vmatpush.msra.mxu0 %v72
    %185 = vmatpush.msra.mxu0 %v71
    %186 = vmatmul.f32.gmra.mxu0 %v168
    %v187 = vpop.f32.mrf.mxu0
    %v188 = vadd.f32 %v165, %v187
    %189 = vdwg.mxu0
    %v190 = vtanh.pop %v188
    %v191 = vxor.u32 %v188, 2147483648
    %v192 = vmul.f32 %v191, 1.442695
    %v193 = vpow.pop %v192
    %v194 = vadd.f32 %v193, 1.0
    %v195 = vrcp.pop %v194
    %v196 = vmul.f32 %v194, %v195
    %v197 = vsub.f32 1.0, %v196
    %v198 = vmul.f32 %v195, %v197
    %v199 = vadd.f32 %v195, %v198
    %vm200 = vweird.f32 %v194
    %vm201 = vweird.f32 %v195
    %vm202 = vmor %vm200, %vm201
    %v203 = vsel %vm202, %v195, %v199
    %v204 = vand.u32 2147483647, %v194
    %vm205 = vcmp.eq.f32.partialorder %v204, 8.507059e+37
    %v206 = vand.u32 %v194, 2147483648
    %v207 = vor.u32 1.1754944e-38, %v206
    %v208 = vsel %vm205, %v207, %v203
    %v209 = vmul.f32 1.0, %v208
    %v210 = vsel %vm69, %v190, %v209
    %v211 = vmul.f32 %v210, 0.0
    %213 = vrot.lane.b32.xlu0 %v210, 64
    %v214 = vpop.permute.xlu0 %213
    %v216 = vmul.f32 %v210, %v214
    %218 = vrot.lane.b32.xlu0 %v216, 32
    %v219 = vpop.permute.xlu0 %218
    %v221 = vadd.f32 %v211, %v219
    %v222 = vtanh.pop %v221
    %224 = vrot.lane.b32.xlu0 %v222, 64
    %v225 = vpop.permute.xlu0 %224
    %v227 = vmul.f32 %v210, %v225
    %229 = vrot.lane.b32.xlu0 %v227, 32
    %v230 = vpop.permute.xlu0 %229
    %232 = vst.msk [vmem:[#allocation2] sm:$0xff] %vm166, %v230
    %s233 = scalar_lea.vmem [#allocation3], 8
    %v234 = vld [vmem:[%s233] sm:$0xff]
    %v235 = vsel %vm166, %v230, 0
    %237 = vmatpush.msra.mxu0 0.0
    %238 = vmatpush.msra.mxu0 0.0
    %239 = vmatpush.msra.mxu0 0.0
    %240 = vmatpush.msra.mxu0 0.0
    %241 = vmatpush.msra.mxu0 0.0
    %242 = vmatpush.msra.mxu0 0.0
    %243 = vmatpush.msra.mxu0 0.0
    %244 = vmatpush.msra.mxu0 0.0
    %245 = vmatpush.msra.mxu0 0.0
    %246 = vmatpush.msra.mxu0 0.0
    %247 = vmatpush.msra.mxu0 0.0
    %248 = vmatpush.msra.mxu0 0.0
    %249 = vmatpush.msra.mxu0 %v74
    %250 = vmatpush.msra.mxu0 %v73
    %251 = vmatpush.msra.mxu0 %v72
    %252 = vmatpush.msra.mxu0 %v71
    %253 = vmatmul.f32.gmra.mxu0 %v235
    %v254 = vpop.f32.mrf.mxu0
    %v255 = vadd.f32 %v234, %v254
    %256 = vdwg.mxu0
    %v257 = vtanh.pop %v255
    %v258 = vxor.u32 %v255, 2147483648
    %v259 = vmul.f32 %v258, 1.442695
    %v260 = vpow.pop %v259
    %v261 = vadd.f32 %v260, 1.0
    %v262 = vrcp.pop %v261
    %v263 = vmul.f32 %v261, %v262
    %v264 = vsub.f32 1.0, %v263
    %v265 = vmul.f32 %v262, %v264
    %v266 = vadd.f32 %v262, %v265
    %vm267 = vweird.f32 %v261
    %vm268 = vweird.f32 %v262
    %vm269 = vmor %vm267, %vm268
    %v270 = vsel %vm269, %v262, %v266
    %v271 = vand.u32 2147483647, %v261
    %vm272 = vcmp.eq.f32.partialorder %v271, 8.507059e+37
    %v273 = vand.u32 %v261, 2147483648
    %v274 = vor.u32 1.1754944e-38, %v273
    %v275 = vsel %vm272, %v274, %v270
    %v276 = vmul.f32 1.0, %v275
    %v277 = vsel %vm69, %v257, %v276
    %v278 = vmul.f32 %v277, %v221
    %280 = vrot.lane.b32.xlu0 %v277, 64
    %v281 = vpop.permute.xlu0 %280
    %v283 = vmul.f32 %v277, %v281
    %285 = vrot.lane.b32.xlu0 %v283, 32
    %v286 = vpop.permute.xlu0 %285
    %v288 = vadd.f32 %v278, %v286
    %v289 = vtanh.pop %v288
    %291 = vrot.lane.b32.xlu0 %v289, 64
    %v292 = vpop.permute.xlu0 %291
    %v294 = vmul.f32 %v277, %v292
    %296 = vrot.lane.b32.xlu0 %v294, 32
    %v297 = vpop.permute.xlu0 %296
    %s299 = scalar_lea.vmem [#allocation2], 8
    %300 = vst.msk [vmem:[%s299] sm:$0xff] %vm166, %v297
    %s301 = scalar_lea.vmem [#allocation3], 16
    %v302 = vld [vmem:[%s301] sm:$0xff]
    %v303 = vsel %vm166, %v297, 0
    %305 = vmatpush.msra.mxu0 0.0
    %306 = vmatpush.msra.mxu0 0.0
    %307 = vmatpush.msra.mxu0 0.0
    %308 = vmatpush.msra.mxu0 0.0
    %309 = vmatpush.msra.mxu0 0.0
    %310 = vmatpush.msra.mxu0 0.0
    %311 = vmatpush.msra.mxu0 0.0
    %312 = vmatpush.msra.mxu0 0.0
    %313 = vmatpush.msra.mxu0 0.0
    %314 = vmatpush.msra.mxu0 0.0
    %315 = vmatpush.msra.mxu0 0.0
    %316 = vmatpush.msra.mxu0 0.0
    %317 = vmatpush.msra.mxu0 %v74
    %318 = vmatpush.msra.mxu0 %v73
    %319 = vmatpush.msra.mxu0 %v72
    %320 = vmatpush.msra.mxu0 %v71
    %321 = vmatmul.f32.gmra.mxu0 %v303
    %v322 = vpop.f32.mrf.mxu0
    %v323 = vadd.f32 %v302, %v322
    %324 = vdwg.mxu0
    %v325 = vtanh.pop %v323
    %v326 = vxor.u32 %v323, 2147483648
    %v327 = vmul.f32 %v326, 1.442695
    %v328 = vpow.pop %v327
    %v329 = vadd.f32 %v328, 1.0
    %v330 = vrcp.pop %v329
    %v331 = vmul.f32 %v329, %v330
    %v332 = vsub.f32 1.0, %v331
    %v333 = vmul.f32 %v330, %v332
    %v334 = vadd.f32 %v330, %v333
    %vm335 = vweird.f32 %v329
    %vm336 = vweird.f32 %v330
    %vm337 = vmor %vm335, %vm336
    %v338 = vsel %vm337, %v330, %v334
    %v339 = vand.u32 2147483647, %v329
    %vm340 = vcmp.eq.f32.partialorder %v339, 8.507059e+37
    %v341 = vand.u32 %v329, 2147483648
    %v342 = vor.u32 1.1754944e-38, %v341
    %v343 = vsel %vm340, %v342, %v338
    %v344 = vmul.f32 1.0, %v343
    %v345 = vsel %vm69, %v325, %v344
    %v346 = vmul.f32 %v345, %v288
    %348 = vrot.lane.b32.xlu0 %v345, 64
    %v349 = vpop.permute.xlu0 %348
    %v351 = vmul.f32 %v345, %v349
    %353 = vrot.lane.b32.xlu0 %v351, 32
    %v354 = vpop.permute.xlu0 %353
    %v356 = vadd.f32 %v346, %v354
    %v357 = vtanh.pop %v356
    %359 = vrot.lane.b32.xlu0 %v357, 64
    %v360 = vpop.permute.xlu0 %359
    %v362 = vmul.f32 %v345, %v360
    %364 = vrot.lane.b32.xlu0 %v362, 32
    %v365 = vpop.permute.xlu0 %364
    %s367 = scalar_lea.vmem [#allocation2], 16
    %368 = vst.msk [vmem:[%s367] sm:$0xff] %vm166, %v365
    %s369 = scalar_lea.vmem [#allocation3], 24
    %v370 = vld [vmem:[%s369] sm:$0xff]
    %v371 = vsel %vm166, %v365, 0
    %373 = vmatpush.msra.mxu0 0.0
    %374 = vmatpush.msra.mxu0 0.0
    %375 = vmatpush.msra.mxu0 0.0
    %376 = vmatpush.msra.mxu0 0.0
    %377 = vmatpush.msra.mxu0 0.0
    %378 = vmatpush.msra.mxu0 0.0
    %379 = vmatpush.msra.mxu0 0.0
    %380 = vmatpush.msra.mxu0 0.0
    %381 = vmatpush.msra.mxu0 0.0
    %382 = vmatpush.msra.mxu0 0.0
    %383 = vmatpush.msra.mxu0 0.0
    %384 = vmatpush.msra.mxu0 0.0
    %385 = vmatpush.msra.mxu0 %v74
    %386 = vmatpush.msra.mxu0 %v73
    %387 = vmatpush.msra.mxu0 %v72
    %388 = vmatpush.msra.mxu0 %v71
    %389 = vmatmul.f32.gmra.mxu0 %v371
    %v390 = vpop.f32.mrf.mxu0
    %v391 = vadd.f32 %v370, %v390
    %392 = vdwg.mxu0
    %v393 = vtanh.pop %v391
    %v394 = vxor.u32 %v391, 2147483648
    %v395 = vmul.f32 %v394, 1.442695
    %v396 = vpow.pop %v395
    %v397 = vadd.f32 %v396, 1.0
    %v398 = vrcp.pop %v397
    %v399 = vmul.f32 %v397, %v398
    %v400 = vsub.f32 1.0, %v399
    %v401 = vmul.f32 %v398, %v400
    %v402 = vadd.f32 %v398, %v401
    %vm403 = vweird.f32 %v397
    %vm404 = vweird.f32 %v398
    %vm405 = vmor %vm403, %vm404
    %v406 = vsel %vm405, %v398, %v402
    %v407 = vand.u32 2147483647, %v397
    %vm408 = vcmp.eq.f32.partialorder %v407, 8.507059e+37
    %v409 = vand.u32 %v397, 2147483648
    %v410 = vor.u32 1.1754944e-38, %v409
    %v411 = vsel %vm408, %v410, %v406
    %v412 = vmul.f32 1.0, %v411
    %v413 = vsel %vm69, %v393, %v412
    %v414 = vmul.f32 %v413, %v356
    %416 = vrot.lane.b32.xlu0 %v413, 64
    %v417 = vpop.permute.xlu0 %416
    %v419 = vmul.f32 %v413, %v417
    %421 = vrot.lane.b32.xlu0 %v419, 32
    %v422 = vpop.permute.xlu0 %421
    %v424 = vadd.f32 %v414, %v422
    %v425 = vtanh.pop %v424
    %427 = vrot.lane.b32.xlu0 %v425, 64
    %v428 = vpop.permute.xlu0 %427
    %v430 = vmul.f32 %v413, %v428
    %432 = vrot.lane.b32.xlu0 %v430, 32
    %v433 = vpop.permute.xlu0 %432
    %s435 = scalar_lea.vmem [#allocation2], 24
    %436 = vst.msk [vmem:[%s435] sm:$0xff] %vm166, %v433
    %s437 = scalar_lea.vmem [#allocation3], 32
    %v438 = vld [vmem:[%s437] sm:$0xff]
    %v439 = vsel %vm166, %v433, 0
    %441 = vmatpush.msra.mxu0 0.0
    %442 = vmatpush.msra.mxu0 0.0
    %443 = vmatpush.msra.mxu0 0.0
    %444 = vmatpush.msra.mxu0 0.0
    %445 = vmatpush.msra.mxu0 0.0
    %446 = vmatpush.msra.mxu0 0.0
    %447 = vmatpush.msra.mxu0 0.0
    %448 = vmatpush.msra.mxu0 0.0
    %449 = vmatpush.msra.mxu0 0.0
    %450 = vmatpush.msra.mxu0 0.0
    %451 = vmatpush.msra.mxu0 0.0
    %452 = vmatpush.msra.mxu0 0.0
    %453 = vmatpush.msra.mxu0 %v74
    %454 = vmatpush.msra.mxu0 %v73
    %455 = vmatpush.msra.mxu0 %v72
    %456 = vmatpush.msra.mxu0 %v71
    %457 = vmatmul.f32.gmra.mxu0 %v439
    %v458 = vpop.f32.mrf.mxu0
    %v459 = vadd.f32 %v438, %v458
    %460 = vdwg.mxu0
    %v461 = vtanh.pop %v459
    %v462 = vxor.u32 %v459, 2147483648
    %v463 = vmul.f32 %v462, 1.442695
    %v464 = vpow.pop %v463
    %v465 = vadd.f32 %v464, 1.0
    %v466 = vrcp.pop %v465
    %v467 = vmul.f32 %v465, %v466
    %v468 = vsub.f32 1.0, %v467
    %v469 = vmul.f32 %v466, %v468
    %v470 = vadd.f32 %v466, %v469
    %vm471 = vweird.f32 %v465
    %vm472 = vweird.f32 %v466
    %vm473 = vmor %vm471, %vm472
    %v474 = vsel %vm473, %v466, %v470
    %v475 = vand.u32 2147483647, %v465
    %vm476 = vcmp.eq.f32.partialorder %v475, 8.507059e+37
    %v477 = vand.u32 %v465, 2147483648
    %v478 = vor.u32 1.1754944e-38, %v477
    %v479 = vsel %vm476, %v478, %v474
    %v480 = vmul.f32 1.0, %v479
    %v481 = vsel %vm69, %v461, %v480
    %v482 = vmul.f32 %v481, %v424
    %484 = vrot.lane.b32.xlu0 %v481, 64
    %v485 = vpop.permute.xlu0 %484
    %v487 = vmul.f32 %v481, %v485
    %489 = vrot.lane.b32.xlu0 %v487, 32
    %v490 = vpop.permute.xlu0 %489
    %v492 = vadd.f32 %v482, %v490
    %v493 = vtanh.pop %v492
    %495 = vrot.lane.b32.xlu0 %v493, 64
    %v496 = vpop.permute.xlu0 %495
    %v498 = vmul.f32 %v481, %v496
    %500 = vrot.lane.b32.xlu0 %v498, 32
    %v501 = vpop.permute.xlu0 %500
    %s503 = scalar_lea.vmem [#allocation2], 32
    %504 = vst.msk [vmem:[%s503] sm:$0xff] %vm166, %v501
    %s505 = scalar_lea.vmem [#allocation3], 40
    %v506 = vld [vmem:[%s505] sm:$0xff]
    %v507 = vsel %vm166, %v501, 0
    %509 = vmatpush.msra.mxu0 0.0
    %510 = vmatpush.msra.mxu0 0.0
    %511 = vmatpush.msra.mxu0 0.0
    %512 = vmatpush.msra.mxu0 0.0
    %513 = vmatpush.msra.mxu0 0.0
    %514 = vmatpush.msra.mxu0 0.0
    %515 = vmatpush.msra.mxu0 0.0
    %516 = vmatpush.msra.mxu0 0.0
    %517 = vmatpush.msra.mxu0 0.0
    %518 = vmatpush.msra.mxu0 0.0
    %519 = vmatpush.msra.mxu0 0.0
    %520 = vmatpush.msra.mxu0 0.0
    %521 = vmatpush.msra.mxu0 %v74
    %522 = vmatpush.msra.mxu0 %v73
    %523 = vmatpush.msra.mxu0 %v72
    %524 = vmatpush.msra.mxu0 %v71
    %525 = vmatmul.f32.gmra.mxu0 %v507
    %v526 = vpop.f32.mrf.mxu0
    %v527 = vadd.f32 %v506, %v526
    %528 = vdwg.mxu0
    %v529 = vtanh.pop %v527
    %v530 = vxor.u32 %v527, 2147483648
    %v531 = vmul.f32 %v530, 1.442695
    %v532 = vpow.pop %v531
    %v533 = vadd.f32 %v532, 1.0
    %v534 = vrcp.pop %v533
    %v535 = vmul.f32 %v533, %v534
    %v536 = vsub.f32 1.0, %v535
    %v537 = vmul.f32 %v534, %v536
    %v538 = vadd.f32 %v534, %v537
    %vm539 = vweird.f32 %v533
    %vm540 = vweird.f32 %v534
    %vm541 = vmor %vm539, %vm540
    %v542 = vsel %vm541, %v534, %v538
    %v543 = vand.u32 2147483647, %v533
    %vm544 = vcmp.eq.f32.partialorder %v543, 8.507059e+37
    %v545 = vand.u32 %v533, 2147483648
    %v546 = vor.u32 1.1754944e-38, %v545
    %v547 = vsel %vm544, %v546, %v542
    %v548 = vmul.f32 1.0, %v547
    %v549 = vsel %vm69, %v529, %v548
    %v550 = vmul.f32 %v549, %v492
    %552 = vrot.lane.b32.xlu0 %v549, 64
    %v553 = vpop.permute.xlu0 %552
    %v555 = vmul.f32 %v549, %v553
    %557 = vrot.lane.b32.xlu0 %v555, 32
    %v558 = vpop.permute.xlu0 %557
    %v560 = vadd.f32 %v550, %v558
    %v561 = vtanh.pop %v560
    %563 = vrot.lane.b32.xlu0 %v561, 64
    %v564 = vpop.permute.xlu0 %563
    %v566 = vmul.f32 %v549, %v564
    %568 = vrot.lane.b32.xlu0 %v566, 32
    %v569 = vpop.permute.xlu0 %568
    %s571 = scalar_lea.vmem [#allocation2], 40
    %572 = vst.msk [vmem:[%s571] sm:$0xff] %vm166, %v569
    %s573 = scalar_lea.vmem [#allocation3], 48
    %v574 = vld [vmem:[%s573] sm:$0xff]
    %v575 = vsel %vm166, %v569, 0
    %577 = vmatpush.msra.mxu0 0.0
    %578 = vmatpush.msra.mxu0 0.0
    %579 = vmatpush.msra.mxu0 0.0
    %580 = vmatpush.msra.mxu0 0.0
    %581 = vmatpush.msra.mxu0 0.0
    %582 = vmatpush.msra.mxu0 0.0
    %583 = vmatpush.msra.mxu0 0.0
    %584 = vmatpush.msra.mxu0 0.0
    %585 = vmatpush.msra.mxu0 0.0
    %586 = vmatpush.msra.mxu0 0.0
    %587 = vmatpush.msra.mxu0 0.0
    %588 = vmatpush.msra.mxu0 0.0
    %589 = vmatpush.msra.mxu0 %v74
    %590 = vmatpush.msra.mxu0 %v73
    %591 = vmatpush.msra.mxu0 %v72
    %592 = vmatpush.msra.mxu0 %v71
    %593 = vmatmul.f32.gmra.mxu0 %v575
    %v594 = vpop.f32.mrf.mxu0
    %v595 = vadd.f32 %v574, %v594
    %596 = vdwg.mxu0
    %v597 = vtanh.pop %v595
    %v598 = vxor.u32 %v595, 2147483648
    %v599 = vmul.f32 %v598, 1.442695
    %v600 = vpow.pop %v599
    %v601 = vadd.f32 %v600, 1.0
    %v602 = vrcp.pop %v601
    %v603 = vmul.f32 %v601, %v602
    %v604 = vsub.f32 1.0, %v603
    %v605 = vmul.f32 %v602, %v604
    %v606 = vadd.f32 %v602, %v605
    %vm607 = vweird.f32 %v601
    %vm608 = vweird.f32 %v602
    %vm609 = vmor %vm607, %vm608
    %v610 = vsel %vm609, %v602, %v606
    %v611 = vand.u32 2147483647, %v601
    %vm612 = vcmp.eq.f32.partialorder %v611, 8.507059e+37
    %v613 = vand.u32 %v601, 2147483648
    %v614 = vor.u32 1.1754944e-38, %v613
    %v615 = vsel %vm612, %v614, %v610
    %v616 = vmul.f32 1.0, %v615
    %v617 = vsel %vm69, %v597, %v616
    %v618 = vmul.f32 %v617, %v560
    %620 = vrot.lane.b32.xlu0 %v617, 64
    %v621 = vpop.permute.xlu0 %620
    %v623 = vmul.f32 %v617, %v621
    %625 = vrot.lane.b32.xlu0 %v623, 32
    %v626 = vpop.permute.xlu0 %625
    %v628 = vadd.f32 %v618, %v626
    %v629 = vtanh.pop %v628
    %631 = vrot.lane.b32.xlu0 %v629, 64
    %v632 = vpop.permute.xlu0 %631
    %v634 = vmul.f32 %v617, %v632
    %636 = vrot.lane.b32.xlu0 %v634, 32
    %v637 = vpop.permute.xlu0 %636
    %s639 = scalar_lea.vmem [#allocation2], 48
    %640 = vst.msk [vmem:[%s639] sm:$0xff] %vm166, %v637
    %s641 = scalar_lea.vmem [#allocation3], 56
    %v642 = vld [vmem:[%s641] sm:$0xff]
    %v643 = vsel %vm166, %v637, 0
    %645 = vmatpush.msra.mxu0 0.0
    %646 = vmatpush.msra.mxu0 0.0
    %647 = vmatpush.msra.mxu0 0.0
    %648 = vmatpush.msra.mxu0 0.0
    %649 = vmatpush.msra.mxu0 0.0
    %650 = vmatpush.msra.mxu0 0.0
    %651 = vmatpush.msra.mxu0 0.0
    %652 = vmatpush.msra.mxu0 0.0
    %653 = vmatpush.msra.mxu0 0.0
    %654 = vmatpush.msra.mxu0 0.0
    %655 = vmatpush.msra.mxu0 0.0
    %656 = vmatpush.msra.mxu0 0.0
    %657 = vmatpush.msra.mxu0 %v74
    %658 = vmatpush.msra.mxu0 %v73
    %659 = vmatpush.msra.mxu0 %v72
    %660 = vmatpush.msra.mxu0 %v71
    %661 = vmatmul.f32.gmra.mxu0 %v643
    %v662 = vpop.f32.mrf.mxu0
    %v663 = vadd.f32 %v642, %v662
    %664 = vdwg.mxu0
    %v665 = vtanh.pop %v663
    %v666 = vxor.u32 %v663, 2147483648
    %v667 = vmul.f32 %v666, 1.442695
    %v668 = vpow.pop %v667
    %v669 = vadd.f32 %v668, 1.0
    %v670 = vrcp.pop %v669
    %v671 = vmul.f32 %v669, %v670
    %v672 = vsub.f32 1.0, %v671
    %v673 = vmul.f32 %v670, %v672
    %v674 = vadd.f32 %v670, %v673
    %vm675 = vweird.f32 %v669
    %vm676 = vweird.f32 %v670
    %vm677 = vmor %vm675, %vm676
    %v678 = vsel %vm677, %v670, %v674
    %v679 = vand.u32 2147483647, %v669
    %vm680 = vcmp.eq.f32.partialorder %v679, 8.507059e+37
    %v681 = vand.u32 %v669, 2147483648
    %v682 = vor.u32 1.1754944e-38, %v681
    %v683 = vsel %vm680, %v682, %v678
    %v684 = vmul.f32 1.0, %v683
    %v685 = vsel %vm69, %v665, %v684
    %v686 = vmul.f32 %v685, %v628
    %688 = vrot.lane.b32.xlu0 %v685, 64
    %v689 = vpop.permute.xlu0 %688
    %v691 = vmul.f32 %v685, %v689
    %693 = vrot.lane.b32.xlu0 %v691, 32
    %v694 = vpop.permute.xlu0 %693
    %v696 = vadd.f32 %v686, %v694
    %v697 = vtanh.pop %v696
    %699 = vrot.lane.b32.xlu0 %v697, 64
    %v700 = vpop.permute.xlu0 %699
    %v702 = vmul.f32 %v685, %v700
    %704 = vrot.lane.b32.xlu0 %v702, 32
    %v705 = vpop.permute.xlu0 %704
    %s707 = scalar_lea.vmem [#allocation2], 56
    %708 = vst.msk [vmem:[%s707] sm:$0xff] %vm166, %v705
    %v709 = vld [vmem:[%s4] sm:$0xff]
    %v710 = vld [vmem:[%s4 + $0x8] sm:$0xff]
    %v711 = vld [vmem:[%s4 + $0x10] sm:$0xff]
    %v712 = vld [vmem:[%s4 + $0x18] sm:$0xff]
    %v713 = vld [vmem:[#allocation4] sm:$0xff]
    %v714 = vld [vmem:[#allocation4 + $0x8] sm:$0xff]
    %v715 = vld [vmem:[#allocation4 + $0x10] sm:$0xff]
    %v716 = vld [vmem:[#allocation4 + $0x18] sm:$0xff]
    %v717 = vld [vmem:[%s6] sm:$0x1]
    %v718 = vld [vmem:[#allocation2] sm:$0xff]
    %v719 = vld [vmem:[#allocation2 + $0x8] sm:$0xff]
    %v720 = vld [vmem:[#allocation2 + $0x10] sm:$0xff]
    %v721 = vld [vmem:[#allocation2 + $0x18] sm:$0xff]
    %v722 = vld [vmem:[#allocation2 + $0x20] sm:$0xff]
    %v723 = vld [vmem:[#allocation2 + $0x28] sm:$0xff]
    %v724 = vld [vmem:[#allocation2 + $0x30] sm:$0xff]
    %v725 = vld [vmem:[#allocation2 + $0x38] sm:$0xff]
    %v727 = vperm.slane %v717, 0
    %v730 = vsel %vm166, %v718, 0
    %v733 = vsel %vm166, %v719, 0
    %v736 = vsel %vm166, %v720, 0
    %v739 = vsel %vm166, %v721, 0
    %v742 = vsel %vm166, %v722, 0
    %v745 = vsel %vm166, %v723, 0
    %v748 = vsel %vm166, %v724, 0
    %v751 = vsel %vm166, %v725, 0
    %753 = vmatpush.msra.mxu0 0.0
    %754 = vmatpush.msra.mxu0 0.0
    %755 = vmatpush.msra.mxu0 0.0
    %756 = vmatpush.msra.mxu0 0.0
    %757 = vmatpush.msra.mxu0 0.0
    %758 = vmatpush.msra.mxu0 0.0
    %759 = vmatpush.msra.mxu0 0.0
    %760 = vmatpush.msra.mxu0 0.0
    %761 = vmatpush.msra.mxu0 0.0
    %762 = vmatpush.msra.mxu0 0.0
    %763 = vmatpush.msra.mxu0 0.0
    %764 = vmatpush.msra.mxu0 0.0
    %765 = vmatpush.msra.mxu0 %v712
    %766 = vmatpush.msra.mxu0 %v711
    %767 = vmatpush.msra.mxu0 %v710
    %768 = vmatpush.msra.mxu0 %v709
    %769 = vmatmul.f32.gmra.mxu0 %v730
    %v770 = vpop.f32.mrf.mxu0
    %v771 = vadd.f32 %v727, %v770
    %772 = vmatmul.f32.gmra.mxu0 %v733
    %v773 = vpop.f32.mrf.mxu0
    %v774 = vadd.f32 %v727, %v773
    %775 = vmatmul.f32.gmra.mxu0 %v736
    %v776 = vpop.f32.mrf.mxu0
    %v777 = vadd.f32 %v727, %v776
    %778 = vmatmul.f32.gmra.mxu0 %v739
    %v779 = vpop.f32.mrf.mxu0
    %v780 = vadd.f32 %v727, %v779
    %781 = vmatmul.f32.gmra.mxu0 %v742
    %v782 = vpop.f32.mrf.mxu0
    %v783 = vadd.f32 %v727, %v782
    %784 = vmatmul.f32.gmra.mxu0 %v745
    %v785 = vpop.f32.mrf.mxu0
    %v786 = vadd.f32 %v727, %v785
    %787 = vmatmul.f32.gmra.mxu0 %v748
    %v788 = vpop.f32.mrf.mxu0
    %v789 = vadd.f32 %v727, %v788
    %790 = vmatmul.f32.gmra.mxu0 %v751
    %v791 = vpop.f32.mrf.mxu0
    %v792 = vadd.f32 %v727, %v791
    %793 = vdwg.mxu0
    %794 = vst [vmem:[#allocation3] sm:$0xff] %v771
    %795 = vst [vmem:[#allocation3 + $0x8] sm:$0xff] %v774
    %796 = vst [vmem:[#allocation3 + $0x10] sm:$0xff] %v777
    %797 = vst [vmem:[#allocation3 + $0x18] sm:$0xff] %v780
    %798 = vst [vmem:[#allocation3 + $0x20] sm:$0xff] %v783
    %799 = vst [vmem:[#allocation3 + $0x28] sm:$0xff] %v786
    %800 = vst [vmem:[#allocation3 + $0x30] sm:$0xff] %v789
    %801 = vst [vmem:[#allocation3 + $0x38] sm:$0xff] %v792
    %v802 = vld [vmem:[#allocation3] sm:$0xff]
    %803 = vmatpush.msra.mxu0 0.0
    %804 = vmatpush.msra.mxu0 0.0
    %805 = vmatpush.msra.mxu0 0.0
    %806 = vmatpush.msra.mxu0 0.0
    %807 = vmatpush.msra.mxu0 0.0
    %808 = vmatpush.msra.mxu0 0.0
    %809 = vmatpush.msra.mxu0 0.0
    %810 = vmatpush.msra.mxu0 0.0
    %811 = vmatpush.msra.mxu0 0.0
    %812 = vmatpush.msra.mxu0 0.0
    %813 = vmatpush.msra.mxu0 0.0
    %814 = vmatpush.msra.mxu0 0.0
    %815 = vmatpush.msra.mxu0 %v716
    %816 = vmatpush.msra.mxu0 %v715
    %817 = vmatpush.msra.mxu0 %v714
    %818 = vmatpush.msra.mxu0 %v713
    %819 = vmatmul.f32.gmra.mxu0 %v168
    %v820 = vpop.f32.mrf.mxu0
    %v821 = vadd.f32 %v802, %v820
    %822 = vdwg.mxu0
    %v823 = vtanh.pop %v821
    %v824 = vxor.u32 %v821, 2147483648
    %v825 = vmul.f32 %v824, 1.442695
    %v826 = vpow.pop %v825
    %v827 = vadd.f32 %v826, 1.0
    %v828 = vrcp.pop %v827
    %v829 = vmul.f32 %v827, %v828
    %v830 = vsub.f32 1.0, %v829
    %v831 = vmul.f32 %v828, %v830
    %v832 = vadd.f32 %v828, %v831
    %vm833 = vweird.f32 %v827
    %vm834 = vweird.f32 %v828
    %vm835 = vmor %vm833, %vm834
    %v836 = vsel %vm835, %v828, %v832
    %v837 = vand.u32 2147483647, %v827
    %vm838 = vcmp.eq.f32.partialorder %v837, 8.507059e+37
    %v839 = vand.u32 %v827, 2147483648
    %v840 = vor.u32 1.1754944e-38, %v839
    %v841 = vsel %vm838, %v840, %v836
    %v842 = vmul.f32 1.0, %v841
    %v843 = vsel %vm69, %v823, %v842
    %v844 = vmul.f32 %v843, 0.0
    %846 = vrot.lane.b32.xlu0 %v843, 64
    %v847 = vpop.permute.xlu0 %846
    %v849 = vmul.f32 %v843, %v847
    %851 = vrot.lane.b32.xlu0 %v849, 32
    %v852 = vpop.permute.xlu0 %851
    %v854 = vadd.f32 %v844, %v852
    %v855 = vtanh.pop %v854
    %857 = vrot.lane.b32.xlu0 %v855, 64
    %v858 = vpop.permute.xlu0 %857
    %v860 = vmul.f32 %v843, %v858
    %862 = vrot.lane.b32.xlu0 %v860, 32
    %v863 = vpop.permute.xlu0 %862
    %865 = vst.msk [vmem:[#allocation2] sm:$0xff] %vm166, %v863
    %v866 = vld [vmem:[%s233] sm:$0xff]
    %v867 = vsel %vm166, %v863, 0
    %869 = vmatpush.msra.mxu0 0.0
    %870 = vmatpush.msra.mxu0 0.0
    %871 = vmatpush.msra.mxu0 0.0
    %872 = vmatpush.msra.mxu0 0.0
    %873 = vmatpush.msra.mxu0 0.0
    %874 = vmatpush.msra.mxu0 0.0
    %875 = vmatpush.msra.mxu0 0.0
    %876 = vmatpush.msra.mxu0 0.0
    %877 = vmatpush.msra.mxu0 0.0
    %878 = vmatpush.msra.mxu0 0.0
    %879 = vmatpush.msra.mxu0 0.0
    %880 = vmatpush.msra.mxu0 0.0
    %881 = vmatpush.msra.mxu0 %v716
    %882 = vmatpush.msra.mxu0 %v715
    %883 = vmatpush.msra.mxu0 %v714
    %884 = vmatpush.msra.mxu0 %v713
    %885 = vmatmul.f32.gmra.mxu0 %v867
    %v886 = vpop.f32.mrf.mxu0
    %v887 = vadd.f32 %v866, %v886
    %888 = vdwg.mxu0
    %v889 = vtanh.pop %v887
    %v890 = vxor.u32 %v887, 2147483648
    %v891 = vmul.f32 %v890, 1.442695
    %v892 = vpow.pop %v891
    %v893 = vadd.f32 %v892, 1.0
    %v894 = vrcp.pop %v893
    %v895 = vmul.f32 %v893, %v894
    %v896 = vsub.f32 1.0, %v895
    %v897 = vmul.f32 %v894, %v896
    %v898 = vadd.f32 %v894, %v897
    %vm899 = vweird.f32 %v893
    %vm900 = vweird.f32 %v894
    %vm901 = vmor %vm899, %vm900
    %v902 = vsel %vm901, %v894, %v898
    %v903 = vand.u32 2147483647, %v893
    %vm904 = vcmp.eq.f32.partialorder %v903, 8.507059e+37
    %v905 = vand.u32 %v893, 2147483648
    %v906 = vor.u32 1.1754944e-38, %v905
    %v907 = vsel %vm904, %v906, %v902
    %v908 = vmul.f32 1.0, %v907
    %v909 = vsel %vm69, %v889, %v908
    %v910 = vmul.f32 %v909, %v854
    %912 = vrot.lane.b32.xlu0 %v909, 64
    %v913 = vpop.permute.xlu0 %912
    %v915 = vmul.f32 %v909, %v913
    %917 = vrot.lane.b32.xlu0 %v915, 32
    %v918 = vpop.permute.xlu0 %917
    %v920 = vadd.f32 %v910, %v918
    %v921 = vtanh.pop %v920
    %923 = vrot.lane.b32.xlu0 %v921, 64
    %v924 = vpop.permute.xlu0 %923
    %v926 = vmul.f32 %v909, %v924
    %928 = vrot.lane.b32.xlu0 %v926, 32
    %v929 = vpop.permute.xlu0 %928
    %931 = vst.msk [vmem:[%s299] sm:$0xff] %vm166, %v929
    %v932 = vld [vmem:[%s301] sm:$0xff]
    %v933 = vsel %vm166, %v929, 0
    %935 = vmatpush.msra.mxu0 0.0
    %936 = vmatpush.msra.mxu0 0.0
    %937 = vmatpush.msra.mxu0 0.0
    %938 = vmatpush.msra.mxu0 0.0
    %939 = vmatpush.msra.mxu0 0.0
    %940 = vmatpush.msra.mxu0 0.0
    %941 = vmatpush.msra.mxu0 0.0
    %942 = vmatpush.msra.mxu0 0.0
    %943 = vmatpush.msra.mxu0 0.0
    %944 = vmatpush.msra.mxu0 0.0
    %945 = vmatpush.msra.mxu0 0.0
    %946 = vmatpush.msra.mxu0 0.0
    %947 = vmatpush.msra.mxu0 %v716
    %948 = vmatpush.msra.mxu0 %v715
    %949 = vmatpush.msra.mxu0 %v714
    %950 = vmatpush.msra.mxu0 %v713
    %951 = vmatmul.f32.gmra.mxu0 %v933
    %v952 = vpop.f32.mrf.mxu0
    %v953 = vadd.f32 %v932, %v952
    %954 = vdwg.mxu0
    %v955 = vtanh.pop %v953
    %v956 = vxor.u32 %v953, 2147483648
    %v957 = vmul.f32 %v956, 1.442695
    %v958 = vpow.pop %v957
    %v959 = vadd.f32 %v958, 1.0
    %v960 = vrcp.pop %v959
    %v961 = vmul.f32 %v959, %v960
    %v962 = vsub.f32 1.0, %v961
    %v963 = vmul.f32 %v960, %v962
    %v964 = vadd.f32 %v960, %v963
    %vm965 = vweird.f32 %v959
    %vm966 = vweird.f32 %v960
    %vm967 = vmor %vm965, %vm966
    %v968 = vsel %vm967, %v960, %v964
    %v969 = vand.u32 2147483647, %v959
    %vm970 = vcmp.eq.f32.partialorder %v969, 8.507059e+37
    %v971 = vand.u32 %v959, 2147483648
    %v972 = vor.u32 1.1754944e-38, %v971
    %v973 = vsel %vm970, %v972, %v968
    %v974 = vmul.f32 1.0, %v973
    %v975 = vsel %vm69, %v955, %v974
    %v976 = vmul.f32 %v975, %v920
    %978 = vrot.lane.b32.xlu0 %v975, 64
    %v979 = vpop.permute.xlu0 %978
    %v981 = vmul.f32 %v975, %v979
    %983 = vrot.lane.b32.xlu0 %v981, 32
    %v984 = vpop.permute.xlu0 %983
    %v986 = vadd.f32 %v976, %v984
    %v987 = vtanh.pop %v986
    %989 = vrot.lane.b32.xlu0 %v987, 64
    %v990 = vpop.permute.xlu0 %989
    %v992 = vmul.f32 %v975, %v990
    %994 = vrot.lane.b32.xlu0 %v992, 32
    %v995 = vpop.permute.xlu0 %994
    %997 = vst.msk [vmem:[%s367] sm:$0xff] %vm166, %v995
    %v998 = vld [vmem:[%s369] sm:$0xff]
    %v999 = vsel %vm166, %v995, 0
    %1001 = vmatpush.msra.mxu0 0.0
    %1002 = vmatpush.msra.mxu0 0.0
    %1003 = vmatpush.msra.mxu0 0.0
    %1004 = vmatpush.msra.mxu0 0.0
    %1005 = vmatpush.msra.mxu0 0.0
    %1006 = vmatpush.msra.mxu0 0.0
    %1007 = vmatpush.msra.mxu0 0.0
    %1008 = vmatpush.msra.mxu0 0.0
    %1009 = vmatpush.msra.mxu0 0.0
    %1010 = vmatpush.msra.mxu0 0.0
    %1011 = vmatpush.msra.mxu0 0.0
    %1012 = vmatpush.msra.mxu0 0.0
    %1013 = vmatpush.msra.mxu0 %v716
    %1014 = vmatpush.msra.mxu0 %v715
    %1015 = vmatpush.msra.mxu0 %v714
    %1016 = vmatpush.msra.mxu0 %v713
    %1017 = vmatmul.f32.gmra.mxu0 %v999
    %v1018 = vpop.f32.mrf.mxu0
    %v1019 = vadd.f32 %v998, %v1018
    %1020 = vdwg.mxu0
    %v1021 = vtanh.pop %v1019
    %v1022 = vxor.u32 %v1019, 2147483648
    %v1023 = vmul.f32 %v1022, 1.442695
    %v1024 = vpow.pop %v1023
    %v1025 = vadd.f32 %v1024, 1.0
    %v1026 = vrcp.pop %v1025
    %v1027 = vmul.f32 %v1025, %v1026
    %v1028 = vsub.f32 1.0, %v1027
    %v1029 = vmul.f32 %v1026, %v1028
    %v1030 = vadd.f32 %v1026, %v1029
    %vm1031 = vweird.f32 %v1025
    %vm1032 = vweird.f32 %v1026
    %vm1033 = vmor %vm1031, %vm1032
    %v1034 = vsel %vm1033, %v1026, %v1030
    %v1035 = vand.u32 2147483647, %v1025
    %vm1036 = vcmp.eq.f32.partialorder %v1035, 8.507059e+37
    %v1037 = vand.u32 %v1025, 2147483648
    %v1038 = vor.u32 1.1754944e-38, %v1037
    %v1039 = vsel %vm1036, %v1038, %v1034
    %v1040 = vmul.f32 1.0, %v1039
    %v1041 = vsel %vm69, %v1021, %v1040
    %v1042 = vmul.f32 %v1041, %v986
    %1044 = vrot.lane.b32.xlu0 %v1041, 64
    %v1045 = vpop.permute.xlu0 %1044
    %v1047 = vmul.f32 %v1041, %v1045
    %1049 = vrot.lane.b32.xlu0 %v1047, 32
    %v1050 = vpop.permute.xlu0 %1049
    %v1052 = vadd.f32 %v1042, %v1050
    %v1053 = vtanh.pop %v1052
    %1055 = vrot.lane.b32.xlu0 %v1053, 64
    %v1056 = vpop.permute.xlu0 %1055
    %v1058 = vmul.f32 %v1041, %v1056
    %1060 = vrot.lane.b32.xlu0 %v1058, 32
    %v1061 = vpop.permute.xlu0 %1060
    %1063 = vst.msk [vmem:[%s435] sm:$0xff] %vm166, %v1061
    %v1064 = vld [vmem:[%s437] sm:$0xff]
    %v1065 = vsel %vm166, %v1061, 0
    %1067 = vmatpush.msra.mxu0 0.0
    %1068 = vmatpush.msra.mxu0 0.0
    %1069 = vmatpush.msra.mxu0 0.0
    %1070 = vmatpush.msra.mxu0 0.0
    %1071 = vmatpush.msra.mxu0 0.0
    %1072 = vmatpush.msra.mxu0 0.0
    %1073 = vmatpush.msra.mxu0 0.0
    %1074 = vmatpush.msra.mxu0 0.0
    %1075 = vmatpush.msra.mxu0 0.0
    %1076 = vmatpush.msra.mxu0 0.0
    %1077 = vmatpush.msra.mxu0 0.0
    %1078 = vmatpush.msra.mxu0 0.0
    %1079 = vmatpush.msra.mxu0 %v716
    %1080 = vmatpush.msra.mxu0 %v715
    %1081 = vmatpush.msra.mxu0 %v714
    %1082 = vmatpush.msra.mxu0 %v713
    %1083 = vmatmul.f32.gmra.mxu0 %v1065
    %v1084 = vpop.f32.mrf.mxu0
    %v1085 = vadd.f32 %v1064, %v1084
    %1086 = vdwg.mxu0
    %v1087 = vtanh.pop %v1085
    %v1088 = vxor.u32 %v1085, 2147483648
    %v1089 = vmul.f32 %v1088, 1.442695
    %v1090 = vpow.pop %v1089
    %v1091 = vadd.f32 %v1090, 1.0
    %v1092 = vrcp.pop %v1091
    %v1093 = vmul.f32 %v1091, %v1092
    %v1094 = vsub.f32 1.0, %v1093
    %v1095 = vmul.f32 %v1092, %v1094
    %v1096 = vadd.f32 %v1092, %v1095
    %vm1097 = vweird.f32 %v1091
    %vm1098 = vweird.f32 %v1092
    %vm1099 = vmor %vm1097, %vm1098
    %v1100 = vsel %vm1099, %v1092, %v1096
    %v1101 = vand.u32 2147483647, %v1091
    %vm1102 = vcmp.eq.f32.partialorder %v1101, 8.507059e+37
    %v1103 = vand.u32 %v1091, 2147483648
    %v1104 = vor.u32 1.1754944e-38, %v1103
    %v1105 = vsel %vm1102, %v1104, %v1100
    %v1106 = vmul.f32 1.0, %v1105
    %v1107 = vsel %vm69, %v1087, %v1106
    %v1108 = vmul.f32 %v1107, %v1052
    %1110 = vrot.lane.b32.xlu0 %v1107, 64
    %v1111 = vpop.permute.xlu0 %1110
    %v1113 = vmul.f32 %v1107, %v1111
    %1115 = vrot.lane.b32.xlu0 %v1113, 32
    %v1116 = vpop.permute.xlu0 %1115
    %v1118 = vadd.f32 %v1108, %v1116
    %v1119 = vtanh.pop %v1118
    %1121 = vrot.lane.b32.xlu0 %v1119, 64
    %v1122 = vpop.permute.xlu0 %1121
    %v1124 = vmul.f32 %v1107, %v1122
    %1126 = vrot.lane.b32.xlu0 %v1124, 32
    %v1127 = vpop.permute.xlu0 %1126
    %1129 = vst.msk [vmem:[%s503] sm:$0xff] %vm166, %v1127
    %v1130 = vld [vmem:[%s505] sm:$0xff]
    %v1131 = vsel %vm166, %v1127, 0
    %1133 = vmatpush.msra.mxu0 0.0
    %1134 = vmatpush.msra.mxu0 0.0
    %1135 = vmatpush.msra.mxu0 0.0
    %1136 = vmatpush.msra.mxu0 0.0
    %1137 = vmatpush.msra.mxu0 0.0
    %1138 = vmatpush.msra.mxu0 0.0
    %1139 = vmatpush.msra.mxu0 0.0
    %1140 = vmatpush.msra.mxu0 0.0
    %1141 = vmatpush.msra.mxu0 0.0
    %1142 = vmatpush.msra.mxu0 0.0
    %1143 = vmatpush.msra.mxu0 0.0
    %1144 = vmatpush.msra.mxu0 0.0
    %1145 = vmatpush.msra.mxu0 %v716
    %1146 = vmatpush.msra.mxu0 %v715
    %1147 = vmatpush.msra.mxu0 %v714
    %1148 = vmatpush.msra.mxu0 %v713
    %1149 = vmatmul.f32.gmra.mxu0 %v1131
    %v1150 = vpop.f32.mrf.mxu0
    %v1151 = vadd.f32 %v1130, %v1150
    %1152 = vdwg.mxu0
    %v1153 = vtanh.pop %v1151
    %v1154 = vxor.u32 %v1151, 2147483648
    %v1155 = vmul.f32 %v1154, 1.442695
    %v1156 = vpow.pop %v1155
    %v1157 = vadd.f32 %v1156, 1.0
    %v1158 = vrcp.pop %v1157
    %v1159 = vmul.f32 %v1157, %v1158
    %v1160 = vsub.f32 1.0, %v1159
    %v1161 = vmul.f32 %v1158, %v1160
    %v1162 = vadd.f32 %v1158, %v1161
    %vm1163 = vweird.f32 %v1157
    %vm1164 = vweird.f32 %v1158
    %vm1165 = vmor %vm1163, %vm1164
    %v1166 = vsel %vm1165, %v1158, %v1162
    %v1167 = vand.u32 2147483647, %v1157
    %vm1168 = vcmp.eq.f32.partialorder %v1167, 8.507059e+37
    %v1169 = vand.u32 %v1157, 2147483648
    %v1170 = vor.u32 1.1754944e-38, %v1169
    %v1171 = vsel %vm1168, %v1170, %v1166
    %v1172 = vmul.f32 1.0, %v1171
    %v1173 = vsel %vm69, %v1153, %v1172
    %v1174 = vmul.f32 %v1173, %v1118
    %1176 = vrot.lane.b32.xlu0 %v1173, 64
    %v1177 = vpop.permute.xlu0 %1176
    %v1179 = vmul.f32 %v1173, %v1177
    %1181 = vrot.lane.b32.xlu0 %v1179, 32
    %v1182 = vpop.permute.xlu0 %1181
    %v1184 = vadd.f32 %v1174, %v1182
    %v1185 = vtanh.pop %v1184
    %1187 = vrot.lane.b32.xlu0 %v1185, 64
    %v1188 = vpop.permute.xlu0 %1187
    %v1190 = vmul.f32 %v1173, %v1188
    %1192 = vrot.lane.b32.xlu0 %v1190, 32
    %v1193 = vpop.permute.xlu0 %1192
    %1195 = vst.msk [vmem:[%s571] sm:$0xff] %vm166, %v1193
    %v1196 = vld [vmem:[%s573] sm:$0xff]
    %v1197 = vsel %vm166, %v1193, 0
    %1199 = vmatpush.msra.mxu0 0.0
    %1200 = vmatpush.msra.mxu0 0.0
    %1201 = vmatpush.msra.mxu0 0.0
    %1202 = vmatpush.msra.mxu0 0.0
    %1203 = vmatpush.msra.mxu0 0.0
    %1204 = vmatpush.msra.mxu0 0.0
    %1205 = vmatpush.msra.mxu0 0.0
    %1206 = vmatpush.msra.mxu0 0.0
    %1207 = vmatpush.msra.mxu0 0.0
    %1208 = vmatpush.msra.mxu0 0.0
    %1209 = vmatpush.msra.mxu0 0.0
    %1210 = vmatpush.msra.mxu0 0.0
    %1211 = vmatpush.msra.mxu0 %v716
    %1212 = vmatpush.msra.mxu0 %v715
    %1213 = vmatpush.msra.mxu0 %v714
    %1214 = vmatpush.msra.mxu0 %v713
    %1215 = vmatmul.f32.gmra.mxu0 %v1197
    %v1216 = vpop.f32.mrf.mxu0
    %v1217 = vadd.f32 %v1196, %v1216
    %1218 = vdwg.mxu0
    %v1219 = vtanh.pop %v1217
    %v1220 = vxor.u32 %v1217, 2147483648
    %v1221 = vmul.f32 %v1220, 1.442695
    %v1222 = vpow.pop %v1221
    %v1223 = vadd.f32 %v1222, 1.0
    %v1224 = vrcp.pop %v1223
    %v1225 = vmul.f32 %v1223, %v1224
    %v1226 = vsub.f32 1.0, %v1225
    %v1227 = vmul.f32 %v1224, %v1226
    %v1228 = vadd.f32 %v1224, %v1227
    %vm1229 = vweird.f32 %v1223
    %vm1230 = vweird.f32 %v1224
    %vm1231 = vmor %vm1229, %vm1230
    %v1232 = vsel %vm1231, %v1224, %v1228
    %v1233 = vand.u32 2147483647, %v1223
    %vm1234 = vcmp.eq.f32.partialorder %v1233, 8.507059e+37
    %v1235 = vand.u32 %v1223, 2147483648
    %v1236 = vor.u32 1.1754944e-38, %v1235
    %v1237 = vsel %vm1234, %v1236, %v1232
    %v1238 = vmul.f32 1.0, %v1237
    %v1239 = vsel %vm69, %v1219, %v1238
    %v1240 = vmul.f32 %v1239, %v1184
    %1242 = vrot.lane.b32.xlu0 %v1239, 64
    %v1243 = vpop.permute.xlu0 %1242
    %v1245 = vmul.f32 %v1239, %v1243
    %1247 = vrot.lane.b32.xlu0 %v1245, 32
    %v1248 = vpop.permute.xlu0 %1247
    %v1250 = vadd.f32 %v1240, %v1248
    %v1251 = vtanh.pop %v1250
    %1253 = vrot.lane.b32.xlu0 %v1251, 64
    %v1254 = vpop.permute.xlu0 %1253
    %v1256 = vmul.f32 %v1239, %v1254
    %1258 = vrot.lane.b32.xlu0 %v1256, 32
    %v1259 = vpop.permute.xlu0 %1258
    %1261 = vst.msk [vmem:[%s639] sm:$0xff] %vm166, %v1259
    %v1262 = vld [vmem:[%s641] sm:$0xff]
    %v1263 = vsel %vm166, %v1259, 0
    %1265 = vmatpush.msra.mxu0 0.0
    %1266 = vmatpush.msra.mxu0 0.0
    %1267 = vmatpush.msra.mxu0 0.0
    %1268 = vmatpush.msra.mxu0 0.0
    %1269 = vmatpush.msra.mxu0 0.0
    %1270 = vmatpush.msra.mxu0 0.0
    %1271 = vmatpush.msra.mxu0 0.0
    %1272 = vmatpush.msra.mxu0 0.0
    %1273 = vmatpush.msra.mxu0 0.0
    %1274 = vmatpush.msra.mxu0 0.0
    %1275 = vmatpush.msra.mxu0 0.0
    %1276 = vmatpush.msra.mxu0 0.0
    %1277 = vmatpush.msra.mxu0 %v716
    %1278 = vmatpush.msra.mxu0 %v715
    %1279 = vmatpush.msra.mxu0 %v714
    %1280 = vmatpush.msra.mxu0 %v713
    %1281 = vmatmul.f32.gmra.mxu0 %v1263
    %v1282 = vpop.f32.mrf.mxu0
    %v1283 = vadd.f32 %v1262, %v1282
    %1284 = vdwg.mxu0
    %v1285 = vtanh.pop %v1283
    %v1286 = vxor.u32 %v1283, 2147483648
    %v1287 = vmul.f32 %v1286, 1.442695
    %v1288 = vpow.pop %v1287
    %v1289 = vadd.f32 %v1288, 1.0
    %v1290 = vrcp.pop %v1289
    %v1291 = vmul.f32 %v1289, %v1290
    %v1292 = vsub.f32 1.0, %v1291
    %v1293 = vmul.f32 %v1290, %v1292
    %v1294 = vadd.f32 %v1290, %v1293
    %vm1295 = vweird.f32 %v1289
    %vm1296 = vweird.f32 %v1290
    %vm1297 = vmor %vm1295, %vm1296
    %v1298 = vsel %vm1297, %v1290, %v1294
    %v1299 = vand.u32 2147483647, %v1289
    %vm1300 = vcmp.eq.f32.partialorder %v1299, 8.507059e+37
    %v1301 = vand.u32 %v1289, 2147483648
    %v1302 = vor.u32 1.1754944e-38, %v1301
    %v1303 = vsel %vm1300, %v1302, %v1298
    %v1304 = vmul.f32 1.0, %v1303
    %v1305 = vsel %vm69, %v1285, %v1304
    %v1306 = vmul.f32 %v1305, %v1250
    %1308 = vrot.lane.b32.xlu0 %v1305, 64
    %v1309 = vpop.permute.xlu0 %1308
    %v1311 = vmul.f32 %v1305, %v1309
    %1313 = vrot.lane.b32.xlu0 %v1311, 32
    %v1314 = vpop.permute.xlu0 %1313
    %v1316 = vadd.f32 %v1306, %v1314
    %v1317 = vtanh.pop %v1316
    %1319 = vrot.lane.b32.xlu0 %v1317, 64
    %v1320 = vpop.permute.xlu0 %1319
    %v1322 = vmul.f32 %v1305, %v1320
    %1324 = vrot.lane.b32.xlu0 %v1322, 32
    %v1325 = vpop.permute.xlu0 %1324
    %1327 = vst.msk [vmem:[%s707] sm:$0xff] %vm166, %v1325
    %v1328 = vld [vmem:[#allocation2] sm:$0xff]
    %v1329 = vld [vmem:[#allocation2 + $0x8] sm:$0xff]
    %v1330 = vld [vmem:[#allocation2 + $0x10] sm:$0xff]
    %v1331 = vld [vmem:[#allocation2 + $0x18] sm:$0xff]
    %v1332 = vld [vmem:[#allocation2 + $0x20] sm:$0xff]
    %v1333 = vld [vmem:[#allocation2 + $0x28] sm:$0xff]
    %v1334 = vld [vmem:[#allocation2 + $0x30] sm:$0xff]
    %v1335 = vld [vmem:[#allocation2 + $0x38] sm:$0xff]
    %v1336 = vld [vmem:[#allocation7] sm:$0xff]
    %v1337 = vld [vmem:[#allocation7 + $0x8] sm:$0xff]
    %v1338 = vld [vmem:[#allocation7 + $0x10] sm:$0xff]
    %v1339 = vld [vmem:[#allocation7 + $0x18] sm:$0xff]
    %v1340 = vld [vmem:[%s8] sm:$0x1]
    %v1342 = vperm.slane %v1340, 0
    %v1345 = vsel %vm166, %v1328, 0
    %v1348 = vsel %vm166, %v1329, 0
    %v1351 = vsel %vm166, %v1330, 0
    %v1354 = vsel %vm166, %v1331, 0
    %v1357 = vsel %vm166, %v1332, 0
    %v1360 = vsel %vm166, %v1333, 0
    %v1363 = vsel %vm166, %v1334, 0
    %v1366 = vsel %vm166, %v1335, 0
    %1368 = vmatpush.msra.mxu0 0.0
    %1369 = vmatpush.msra.mxu0 0.0
    %1370 = vmatpush.msra.mxu0 0.0
    %1371 = vmatpush.msra.mxu0 0.0
    %1372 = vmatpush.msra.mxu0 0.0
    %1373 = vmatpush.msra.mxu0 0.0
    %1374 = vmatpush.msra.mxu0 0.0
    %1375 = vmatpush.msra.mxu0 0.0
    %1376 = vmatpush.msra.mxu0 0.0
    %1377 = vmatpush.msra.mxu0 0.0
    %1378 = vmatpush.msra.mxu0 0.0
    %1379 = vmatpush.msra.mxu0 0.0
    %1380 = vmatpush.msra.mxu0 %v1339
    %1381 = vmatpush.msra.mxu0 %v1338
    %1382 = vmatpush.msra.mxu0 %v1337
    %1383 = vmatpush.msra.mxu0 %v1336
    %1384 = vmatmul.f32.gmra.mxu0 %v1345
    %v1385 = vpop.f32.mrf.mxu0
    %v1386 = vadd.f32 %v1342, %v1385
    %1387 = vmatmul.f32.gmra.mxu0 %v1348
    %v1388 = vpop.f32.mrf.mxu0
    %v1389 = vadd.f32 %v1342, %v1388
    %1390 = vmatmul.f32.gmra.mxu0 %v1351
    %v1391 = vpop.f32.mrf.mxu0
    %v1392 = vadd.f32 %v1342, %v1391
    %1393 = vmatmul.f32.gmra.mxu0 %v1354
    %v1394 = vpop.f32.mrf.mxu0
    %v1395 = vadd.f32 %v1342, %v1394
    %1396 = vmatmul.f32.gmra.mxu0 %v1357
    %v1397 = vpop.f32.mrf.mxu0
    %v1398 = vadd.f32 %v1342, %v1397
    %1399 = vmatmul.f32.gmra.mxu0 %v1360
    %v1400 = vpop.f32.mrf.mxu0
    %v1401 = vadd.f32 %v1342, %v1400
    %1402 = vmatmul.f32.gmra.mxu0 %v1363
    %v1403 = vpop.f32.mrf.mxu0
    %v1404 = vadd.f32 %v1342, %v1403
    %1405 = vmatmul.f32.gmra.mxu0 %v1366
    %v1406 = vpop.f32.mrf.mxu0
    %v1407 = vadd.f32 %v1342, %v1406
    %1408 = vdwg.mxu0
    %1409 = vst [vmem:[#allocation9] sm:$0xff] %v1386
    %1410 = vst [vmem:[#allocation9 + $0x8] sm:$0xff] %v1389
    %1411 = vst [vmem:[#allocation9 + $0x10] sm:$0xff] %v1392
    %1412 = vst [vmem:[#allocation9 + $0x18] sm:$0xff] %v1395
    %1413 = vst [vmem:[#allocation9 + $0x20] sm:$0xff] %v1398
    %1414 = vst [vmem:[#allocation9 + $0x28] sm:$0xff] %v1401
    %1415 = vst [vmem:[#allocation9 + $0x30] sm:$0xff] %v1404
    %1416 = vst [vmem:[#allocation9 + $0x38] sm:$0xff] %v1407
    // Predicated region
    $region46: #{tpu_custom_call.1} parent=1 // pred_check
      _
    $region47: #{tpu_custom_call.1} parent=1 // pred_check_branch
      %1418 = sbr.rel (0) target = $region49
    $region48: #{tpu_custom_call.1} parent=1 // pred_region
      %1420 = vsyncadd [#allocation6], 0
      %s1421 = sshll.u32 [#allocation9], 4
      %s1422 = int_to_ptr.vmem [resolvable:$true] %s1421
      %s1423 = sshll.u32 %s9, 4
      %s1424 = int_to_ptr.hbm [resolvable:$true] %s1423
      %1429 = dma.vmem_to_hbm [thread:$0]  %s1422, 1024, %s1424, [#allocation6], 128, 128, 8
    $region49: #{tpu_custom_call.1} parent=1 // pred_fallthru
      _
    // Predicated region
    $region50: #{tpu_custom_call.1} parent=1 // pred_check
      _
    $region51: #{tpu_custom_call.1} parent=1 // pred_check_branch
      %1431 = sbr.rel (0) target = $region53
    $region52: #{tpu_custom_call.1} parent=1 // pred_region
      %1433 = dma.done [#allocation6], 1024
    $region53: #{tpu_custom_call.1} parent=1 // pred_fallthru
      _
    %1434 = vsyncpa [#allocation5], 1
    %1435 = vsyncpa [#allocation8], 1
    %1436 = vsyncpa [#allocation6], 1

</llo_original>
